<compile_context>
chip_gen: v7x
topology: tpu7x:2x2x1
jax: 0.10.0
libtpu: 0.0.40
codegen_flags: <defaults>
</compile_context>

<pallas_src>
import math

import numpy as np
import jax
import jax.numpy as jnp
from jax.experimental import pallas as pl
from jax.experimental.pallas import tpu as pltpu

NEG_SLOPE = 0.01  # torch.nn.LeakyReLU default negative_slope


def _round_up(n, m):
    return -(-n // m) * m


def _cdiv(a, b):
    return -(-a // b)


def _encoder_layer_sizes(input_size, output_size, n_layers):
    """Reproduce the layer-size arithmetic from Encoder.__init__ exactly."""
    sizes = []
    if n_layers > 1:
        size_reduction_per_layer = (input_size - output_size) / n_layers
        layer_output_size = input_size
        for i in range(n_layers - 1):
            layer_input_size = input_size - int(size_reduction_per_layer) * i
            layer_output_size = input_size - int(size_reduction_per_layer) * (i + 1)
            sizes.append((layer_input_size, layer_output_size))
        sizes.append((layer_output_size, output_size))
    else:
        sizes.append((input_size, output_size))
    return sizes


def make_encoder_kernel(layer_dims, neg_slope=NEG_SLOPE):
    """Kernel over one (TB, in_size) batch tile.

    layer_dims[i] = (k_i, n_i): exact slice of the resident parameter slab used by
    layer i's matmul (k = incoming activation width, n = outgoing width).
    Intermediate widths are lane-dense (multiples of 128, zero-padded -> value
    preserving); layer 0 uses the true in_size, the last layer the true out_size.

    Refs: x_ref (TB, in_size) f32, w_ref (L, PI_max, PO_max) param_dtype,
          b_ref (L, 1, PO_max) f32, o_ref (TB, out_size) out_dtype.
    """
    n_layers = len(layer_dims)

    def kernel(x_ref, w_ref, b_ref, o_ref):
        h = x_ref[...]
        for i, (k, n) in enumerate(layer_dims):
            w = w_ref[i][:k, :n]          # static slice of the VMEM-resident slab
            b = b_ref[i][:, :n]           # (1, n) f32
            # MXU: bf16 x bf16 -> f32 accumulate; bias add + LeakyReLU in f32 on the
            # VPU (v5e has no bf16 VALU).
            h = jnp.dot(h.astype(w.dtype), w,
                        preferred_element_type=jnp.float32) + b
            if i < n_layers - 1:
                h = jnp.where(h >= 0, h, neg_slope * h)
        o_ref[...] = h.astype(o_ref.dtype)

    return kernel


def _choose_tile(batch, block_b, min_steps):
    """Large batch tiles, but keep >= min_steps grid steps when the batch allows it
    (v7x megacore sharding + intra-core DMA/compute pipelining).  Multiple of 16."""
    tb = min(block_b, _round_up(batch, 16))
    while tb > 256 and _cdiv(batch, tb) < min_steps:
        tb //= 2
    return max(16, _round_up(tb, 16))


def build_encoder_forward(params, *, block_b=512, out_dtype=jnp.float32,
                          param_dtype=jnp.bfloat16, min_grid_steps=4):
    """Pack parameters once and return a jitted fused forward fn.

    params: list of (w_t, b) per layer; w_t shape (fan_in, fan_out) (pre-transposed
            PyTorch Linear weight), b shape (fan_out,).  y = x @ w_t + b per layer.
    """
    L = len(params)
    true_sizes = [(w.shape[0], w.shape[1]) for (w, _) in params]
    in_size = true_sizes[0][0]
    out_size = true_sizes[-1][1]

    # Lane-dense internal widths (multiples of 128; zero padding is value-preserving
    # through Linear + LeakyReLU).  Note: for widths > 128 on v6e/v7x a 256 multiple
    # would fill the 256x256 MXU better; 128 is optimal at these tiny widths / on v5e.
    padded = [(_round_up(k, 128), _round_up(n, 128)) for (k, n) in true_sizes]
    PI_max = max(pk for pk, _ in padded)
    PO_max = max(pn for _, pn in padded)

    # Per-layer matmul dims: true in_size on entry, true out_size on exit,
    # lane-dense 128-multiples in between.
    layer_dims = []
    for i, ((kt, nt), (kp, np_)) in enumerate(zip(true_sizes, padded)):
        k = kt if i == 0 else kp
        n = nt if i == L - 1 else np_
        layer_dims.append((k, n))

    # Pack all parameters into two zero-padded slabs ONCE (hoisted out of the
    # per-call path).  Constant index_map keeps them VMEM-resident across tiles.
    w_np = np.zeros((L, PI_max, PO_max), np.float32)
    b_np = np.zeros((L, 1, PO_max), np.float32)
    for i, (w, b) in enumerate(params):
        w_np[i, : w.shape[0], : w.shape[1]] = np.asarray(w, np.float32)
        b_np[i, 0, : b.shape[0]] = np.asarray(b, np.float32)
    w_slab = jnp.asarray(w_np, dtype=param_dtype)
    b_slab = jnp.asarray(b_np, dtype=jnp.float32)

    kernel = make_encoder_kernel(layer_dims)
    param_bytes = (w_slab.size * w_slab.dtype.itemsize
                   + b_slab.size * b_slab.dtype.itemsize)

    def _forward(x):
        B = x.shape[0]
        assert x.shape[1] == in_size, (x.shape, in_size)
        TB = _choose_tile(B, block_b, min_grid_steps)
        grid = (_cdiv(B, TB),)

        # Explicit scoped-VMEM budget: double-buffered activation/output tiles
        # + (default double-buffered) parameter slabs + headroom.
        est = (2 * TB * in_size * x.dtype.itemsize
               + 2 * TB * out_size * jnp.dtype(out_dtype).itemsize
               + 2 * param_bytes)
        vmem_limit = int(min(64 << 20, max(16 << 20, 2 * est + (4 << 20))))

        return pl.pallas_call(
            kernel,
            out_shape=jax.ShapeDtypeStruct((B, out_size), out_dtype),
            grid=grid,
            in_specs=[
                # Activation tile: unpadded (TB, in_size); last block dim equals the
                # full array dim, so no feature padding / extra HBM pass is needed.
                pl.BlockSpec((TB, in_size), lambda i: (i, 0)),
                # Parameter slabs: constant index_map -> fetched once, VMEM-resident.
                pl.BlockSpec((L, PI_max, PO_max), lambda i: (0, 0, 0)),
                pl.BlockSpec((L, 1, PO_max), lambda i: (0, 0, 0)),
            ],
            # Exact (TB, out_size) output block: no padded f32 slab, no post-slice.
            out_specs=pl.BlockSpec((TB, out_size), lambda i: (i, 0)),
            compiler_params=pltpu.CompilerParams(
                dimension_semantics=("parallel",),  # batch tiles shard across TCs
                vmem_limit_bytes=vmem_limit,
            ),
        )(x, w_slab, b_slab)

    return jax.jit(_forward)


if __name__ == "__main__":
    # Configuration consistent with the module's constructor logic:
    # input_size=32, output_size=8, n_layers=3  ->  32 -> 24 -> 16 -> 8
    INPUT_SIZE, OUTPUT_SIZE, N_LAYERS = 32, 8, 3
    BATCH = 2048          # 4 grid steps of 512 rows -> exercises batch tiling

    sizes = _encoder_layer_sizes(INPUT_SIZE, OUTPUT_SIZE, N_LAYERS)

    # Deterministic parameter init (PyTorch Linear's U(-1/sqrt(fan_in), +) bound).
    key = jax.random.PRNGKey(0)
    params = []
    for (fan_in, fan_out) in sizes:
        key, kw, kb = jax.random.split(key, 3)
        bound = 1.0 / math.sqrt(fan_in)
        w_t = jax.random.uniform(kw, (fan_in, fan_out), jnp.float32, -bound, bound)
        b = jax.random.uniform(kb, (fan_out,), jnp.float32, -bound, bound)
        params.append((w_t, b))

    key, kx = jax.random.split(key)
    x = jax.random.normal(kx, (BATCH, INPUT_SIZE), jnp.float32)

    forward = build_encoder_forward(params, block_b=512)
    y = jax.block_until_ready(forward(x))
    assert y.shape == (BATCH, OUTPUT_SIZE), y.shape

    # Reference 1: mirrors the kernel's bf16-operand / f32-accumulate numerics.
    h = x.astype(jnp.float32)
    for i, (w_t, b) in enumerate(params):
        hq = h.astype(jnp.bfloat16).astype(jnp.float32)
        wq = w_t.astype(jnp.bfloat16).astype(jnp.float32)
        h = hq @ wq + b.reshape(1, -1)
        if i < len(params) - 1:
            h = jnp.where(h >= 0, h, NEG_SLOPE * h)
    assert jnp.allclose(y, h, atol=1e-3, rtol=1e-3), "mismatch vs bf16 reference"

    # Reference 2: pure f32 (PyTorch nn.Linear semantics); loose tolerance bounds
    # the bf16 quantization error of the fast path.
    hf = x.astype(jnp.float32)
    for i, (w_t, b) in enumerate(params):
        hf = hf @ w_t + b.reshape(1, -1)
        if i < len(params) - 1:
            hf = jnp.where(hf >= 0, hf, NEG_SLOPE * hf)
    assert jnp.allclose(y, hf, atol=0.2), "excessive deviation vs f32 reference"

    print("KERNEL_OK")
</pallas_src>

<mosaic_0001>
module attributes {stable_mosaic.version = 11 : i64} {
  func.func @kernel(%arg0: i32, %arg1: memref<512x32xf32, #tpu.memory_space<vmem>>, %arg2: memref<3x128x128xbf16, #tpu.memory_space<vmem>>, %arg3: memref<3x1x128xf32, #tpu.memory_space<vmem>>, %arg4: memref<512x8xf32, #tpu.memory_space<vmem>>) attributes {dimension_semantics = [#tpu.dimension_semantics<parallel>], iteration_bounds = array<i64: 4>, scalar_prefetch = 0 : i64, scratch_operands = 0 : i64, tpu.core_type = #tpu.core_type<tc>, window_params = [{transform_indices = @transform_0, window_bounds = array<i64: 512, 32>}, {pipeline_mode = #tpu.pipeline_mode<synchronous>, transform_indices = @transform_1, window_bounds = array<i64: 3, 128, 128>}, {pipeline_mode = #tpu.pipeline_mode<synchronous>, transform_indices = @transform_2, window_bounds = array<i64: 3, 1, 128>}, {transform_indices = @transform_3, window_bounds = array<i64: 512, 8>}]} {
    %c0 = arith.constant 0 : index
    %c0_0 = arith.constant 0 : index
    %0 = vector.load %arg1[%c0, %c0_0] : memref<512x32xf32, #tpu.memory_space<vmem>>, vector<512x32xf32>
    %c0_1 = arith.constant 0 : index
    %c0_2 = arith.constant 0 : index
    %c0_3 = arith.constant 0 : index
    %1 = vector.load %arg2[%c0_1, %c0_2, %c0_3] : memref<3x128x128xbf16, #tpu.memory_space<vmem>>, vector<1x128x128xbf16>
    %2 = vector.shape_cast %1 : vector<1x128x128xbf16> to vector<128x128xbf16>
    %3 = vector.extract_strided_slice %2 {offsets = [0, 0], sizes = [32, 128], strides = [1, 1]} : vector<128x128xbf16> to vector<32x128xbf16>
    %c0_4 = arith.constant 0 : index
    %c0_5 = arith.constant 0 : index
    %c0_6 = arith.constant 0 : index
    %4 = vector.load %arg3[%c0_4, %c0_5, %c0_6] : memref<3x1x128xf32, #tpu.memory_space<vmem>>, vector<1x1x128xf32>
    %5 = vector.shape_cast %4 : vector<1x1x128xf32> to vector<1x128xf32>
    %6 = arith.truncf %0 : vector<512x32xf32> to vector<512x32xbf16>
    %cst = arith.constant dense<0.000000e+00> : vector<512x128xf32>
    %7 = tpu.matmul %6, %3, %cst {dimension_numbers = #tpu.dot_dimension_numbers<[1], [0], [0], [1], [0, 0, 1, 1], [], []>} : vector<512x32xbf16>, vector<32x128xbf16>, vector<512x128xf32> -> vector<512x128xf32>
    %8 = vector.broadcast %5 : vector<1x128xf32> to vector<512x128xf32>
    %9 = arith.addf %7, %8 : vector<512x128xf32>
    %cst_7 = arith.constant 0.000000e+00 : f32
    %10 = vector.broadcast %cst_7 : f32 to vector<512x128xf32>
    %11 = arith.cmpf oge, %9, %10 : vector<512x128xf32>
    %cst_8 = arith.constant 0.00999999977 : f32
    %12 = vector.broadcast %cst_8 : f32 to vector<512x128xf32>
    %13 = arith.mulf %12, %9 : vector<512x128xf32>
    %14 = arith.select %11, %9, %13 : vector<512x128xi1>, vector<512x128xf32>
    %c1 = arith.constant 1 : index
    %c0_9 = arith.constant 0 : index
    %c0_10 = arith.constant 0 : index
    %15 = vector.load %arg2[%c1, %c0_9, %c0_10] : memref<3x128x128xbf16, #tpu.memory_space<vmem>>, vector<1x128x128xbf16>
    %16 = vector.shape_cast %15 : vector<1x128x128xbf16> to vector<128x128xbf16>
    %c1_11 = arith.constant 1 : index
    %c0_12 = arith.constant 0 : index
    %c0_13 = arith.constant 0 : index
    %17 = vector.load %arg3[%c1_11, %c0_12, %c0_13] : memref<3x1x128xf32, #tpu.memory_space<vmem>>, vector<1x1x128xf32>
    %18 = vector.shape_cast %17 : vector<1x1x128xf32> to vector<1x128xf32>
    %19 = arith.truncf %14 : vector<512x128xf32> to vector<512x128xbf16>
    %cst_14 = arith.constant dense<0.000000e+00> : vector<512x128xf32>
    %20 = tpu.matmul %19, %16, %cst_14 {dimension_numbers = #tpu.dot_dimension_numbers<[1], [0], [0], [1], [0, 0, 1, 1], [], []>} : vector<512x128xbf16>, vector<128x128xbf16>, vector<512x128xf32> -> vector<512x128xf32>
    %21 = vector.broadcast %18 : vector<1x128xf32> to vector<512x128xf32>
    %22 = arith.addf %20, %21 : vector<512x128xf32>
    %cst_15 = arith.constant 0.000000e+00 : f32
    %23 = vector.broadcast %cst_15 : f32 to vector<512x128xf32>
    %24 = arith.cmpf oge, %22, %23 : vector<512x128xf32>
    %cst_16 = arith.constant 0.00999999977 : f32
    %25 = vector.broadcast %cst_16 : f32 to vector<512x128xf32>
    %26 = arith.mulf %25, %22 : vector<512x128xf32>
    %27 = arith.select %24, %22, %26 : vector<512x128xi1>, vector<512x128xf32>
    %c2 = arith.constant 2 : index
    %c0_17 = arith.constant 0 : index
    %c0_18 = arith.constant 0 : index
    %28 = vector.load %arg2[%c2, %c0_17, %c0_18] : memref<3x128x128xbf16, #tpu.memory_space<vmem>>, vector<1x128x128xbf16>
    %29 = vector.shape_cast %28 : vector<1x128x128xbf16> to vector<128x128xbf16>
    %30 = vector.extract_strided_slice %29 {offsets = [0, 0], sizes = [128, 8], strides = [1, 1]} : vector<128x128xbf16> to vector<128x8xbf16>
    %c2_19 = arith.constant 2 : index
    %c0_20 = arith.constant 0 : index
    %c0_21 = arith.constant 0 : index
    %31 = vector.load %arg3[%c2_19, %c0_20, %c0_21] : memref<3x1x128xf32, #tpu.memory_space<vmem>>, vector<1x1x128xf32>
    %32 = vector.shape_cast %31 : vector<1x1x128xf32> to vector<1x128xf32>
    %33 = vector.extract_strided_slice %32 {offsets = [0, 0], sizes = [1, 8], strides = [1, 1]} : vector<1x128xf32> to vector<1x8xf32>
    %34 = arith.truncf %27 : vector<512x128xf32> to vector<512x128xbf16>
    %cst_22 = arith.constant dense<0.000000e+00> : vector<512x8xf32>
    %35 = tpu.matmul %34, %30, %cst_22 {dimension_numbers = #tpu.dot_dimension_numbers<[1], [0], [0], [1], [0, 0, 1, 1], [], []>} : vector<512x128xbf16>, vector<128x8xbf16>, vector<512x8xf32> -> vector<512x8xf32>
    %36 = vector.broadcast %33 : vector<1x8xf32> to vector<512x8xf32>
    %37 = arith.addf %35, %36 : vector<512x8xf32>
    %c0_23 = arith.constant 0 : index
    %c0_24 = arith.constant 0 : index
    %38 = vector.load %arg4[%c0_23, %c0_24] : memref<512x8xf32, #tpu.memory_space<vmem>>, vector<512x8xf32>
    tpu.vector_store %arg4[%c0_23, %c0_24], %37 {strides = array<i32>} : memref<512x8xf32, #tpu.memory_space<vmem>>, vector<512x8xf32>,
    return
  }
  func.func @transform_0(%arg0: i32) -> (i32, i32) {
    %c0_i32 = arith.constant 0 : i32
    %c0_i32_0 = arith.constant 0 : i32
    return %arg0, %c0_i32 : i32, i32
  }
  func.func @transform_1(%arg0: i32) -> (i32, i32, i32) {
    %c0_i32 = arith.constant 0 : i32
    %c0_i32_0 = arith.constant 0 : i32
    %c0_i32_1 = arith.constant 0 : i32
    %c0_i32_2 = arith.constant 0 : i32
    return %c0_i32, %c0_i32_0, %c0_i32_1 : i32, i32, i32
  }
  func.func @transform_2(%arg0: i32) -> (i32, i32, i32) {
    %c0_i32 = arith.constant 0 : i32
    %c0_i32_0 = arith.constant 0 : i32
    %c0_i32_1 = arith.constant 0 : i32
    %c0_i32_2 = arith.constant 0 : i32
    return %c0_i32, %c0_i32_0, %c0_i32_1 : i32, i32, i32
  }
  func.func @transform_3(%arg0: i32) -> (i32, i32) {
    %c0_i32 = arith.constant 0 : i32
    %c0_i32_0 = arith.constant 0 : i32
    return %arg0, %c0_i32 : i32, i32
  }
}

</mosaic_0001>

<llo_original>
// kernel: _forward.1
$region0: #{_forward.1}
  #allocation0 [shape = 'u32[]', space=smem, size = 0x4, offset = 0x4, fixed_abs, tag = 'smem constant byte address 0x4 - core index']
  #allocation1 [shape = 'u32[144,128]{1,0:T(1,128)}', space=vmem, size = 0x12000, scoped, tag = 'internal scratch']
  %s0 = inlined_call_operand.vmem [shape: f32[2048,32], index: 0, kind: input, shape index: {}]
  %s1 = inlined_call_operand.vmem [shape: bf16[3,128,128], index: 1, kind: input, shape index: {}]
  %s2 = inlined_call_operand.vmem [shape: f32[3,1,128], index: 2, kind: input, shape index: {}]
  %s3 = inlined_call_operand.vmem [shape: f32[2048,8], index: 3, kind: output, shape index: {}]
  %s4 = sld [smem:[#allocation0]]
  $region45: #{_forward.1} parent=0
    _
  %s6 = ssub.s32 1, %s4
  %s7 = scalar_select 0, %s6, %s4
  loop: start=0, step=1, limit=6
  $region2: #{_forward.1} parent=0 // loop_pre_header
    _
  $region3: #{_forward.1} parent=0 // loop_header
    %s9 = sphi 0, %s13
    %p10 = scmp.ge.s32.totalorder %s9, 6
    %s19 = sphi 0, %s21
    %s22 = sphi 0, %s19
    %s23 = sphi 0, %s22
    %s39 = sphi 0, %s23
    %s43 = sphi 0, %s43
    %s45 = sphi 0, %s43
    %s46 = sphi 0, %s45
    %s60 = sphi 0, %s46
    %s64 = sphi 0, %s64
    %s66 = sphi 0, %s64
    %s67 = sphi 0, %s66
    %s81 = sphi 0, %s67
    %s87 = sphi 0, %s89
    %s90 = sphi 0, %s87
    %s91 = sphi 0, %s90
    %s107 = sphi 0, %s91
  $region4: #{_forward.1} parent=0 // loop_header_branch
    %12 = sbr.rel (%p10) target = $region8
  $region5: #{_forward.1} parent=0 // loop_body
    %s14 = ssub.s32 %s9, 1
    %s15 = ssub.s32 %s9, 2
    %s16 = sadd.s32 %s9, 1
    %s17 = ssub.s32 %s9, %s16
    %p18 = scmp.eq.s32.totalorder %s17, 0
    %s20 = sadd.s32 %s19, 1
    %s21 = scalar_select %p18, %s19, %s20
    %p24 = pneg %p18
    %p25 = scmp.eq.s32.totalorder %s9, 3
    %p26 = por %p24, %p25
    %p27 = scmp.ne.s32.totalorder %s19, %s22
    %p28 = scmp.eq.s32.totalorder %s9, 0
    %p29 = por %p27, %p28
    %p30 = scmp.ne.s32.totalorder %s19, %s22
    %p31 = scmp.eq.s32.totalorder %s14, 3
    %p32 = por %p30, %p31
    %p33 = scmp.ne.s32.totalorder %s22, %s23
    %p34 = scmp.eq.s32.totalorder %s14, 0
    %p35 = por %p33, %p34
    %p36 = scmp.ne.s32.totalorder %s22, %s23
    %p37 = scmp.eq.s32.totalorder %s15, 3
    %p38 = por %p36, %p37
    %p40 = scmp.ne.s32.totalorder %s23, %s39
    %p41 = scmp.eq.s32.totalorder %s15, 0
    %p42 = por %p40, %p41
    %s44 = sadd.s32 %s43, 1
    %p47 = scmp.eq.s32.totalorder %s9, 3
    %p48 = scmp.ne.s32.totalorder %s43, %s45
    %p49 = scmp.eq.s32.totalorder %s9, 0
    %p50 = por %p48, %p49
    %p51 = scmp.ne.s32.totalorder %s43, %s45
    %p52 = scmp.eq.s32.totalorder %s14, 3
    %p53 = por %p51, %p52
    %p54 = scmp.ne.s32.totalorder %s45, %s46
    %p55 = scmp.eq.s32.totalorder %s14, 0
    %p56 = por %p54, %p55
    %p57 = scmp.ne.s32.totalorder %s45, %s46
    %p58 = scmp.eq.s32.totalorder %s15, 3
    %p59 = por %p57, %p58
    %p61 = scmp.ne.s32.totalorder %s46, %s60
    %p62 = scmp.eq.s32.totalorder %s15, 0
    %p63 = por %p61, %p62
    %s65 = sadd.s32 %s64, 1
    %p68 = scmp.eq.s32.totalorder %s9, 3
    %p69 = scmp.ne.s32.totalorder %s64, %s66
    %p70 = scmp.eq.s32.totalorder %s9, 0
    %p71 = por %p69, %p70
    %p72 = scmp.ne.s32.totalorder %s64, %s66
    %p73 = scmp.eq.s32.totalorder %s14, 3
    %p74 = por %p72, %p73
    %p75 = scmp.ne.s32.totalorder %s66, %s67
    %p76 = scmp.eq.s32.totalorder %s14, 0
    %p77 = por %p75, %p76
    %p78 = scmp.ne.s32.totalorder %s66, %s67
    %p79 = scmp.eq.s32.totalorder %s15, 3
    %p80 = por %p78, %p79
    %p82 = scmp.ne.s32.totalorder %s67, %s81
    %p83 = scmp.eq.s32.totalorder %s15, 0
    %p84 = por %p82, %p83
    %s85 = ssub.s32 %s9, %s16
    %p86 = scmp.eq.s32.totalorder %s85, 0
    %s88 = sadd.s32 %s87, 1
    %s89 = scalar_select %p86, %s87, %s88
    %p92 = pneg %p86
    %p93 = scmp.eq.s32.totalorder %s9, 3
    %p94 = por %p92, %p93
    %p95 = scmp.ne.s32.totalorder %s87, %s90
    %p96 = scmp.eq.s32.totalorder %s9, 0
    %p97 = por %p95, %p96
    %p98 = scmp.ne.s32.totalorder %s87, %s90
    %p99 = scmp.eq.s32.totalorder %s14, 3
    %p100 = por %p98, %p99
    %p101 = scmp.ne.s32.totalorder %s90, %s91
    %p102 = scmp.eq.s32.totalorder %s14, 0
    %p103 = por %p101, %p102
    %p104 = scmp.ne.s32.totalorder %s90, %s91
    %p105 = scmp.eq.s32.totalorder %s15, 3
    %p106 = por %p104, %p105
    %p108 = scmp.ne.s32.totalorder %s91, %s107
    %p109 = scmp.eq.s32.totalorder %s15, 0
    %p110 = por %p108, %p109
    %p111 = scmp.le.s32.totalorder 1, %s9
    %p112 = scmp.lt.s32.totalorder %s9, 5
    %p113 = pnand %p111, %p112
    %p114 = pneg %p113
    // Predicated region
    $region9: #{_forward.1} parent=5 // pred_check
      _
    $region10: #{_forward.1} parent=5 // pred_check_branch
      %116 = sbr.rel (%p113) target = $region12
    $region11: #{_forward.1} parent=5 // pred_region
      %s117 = ssub.s32 %s9, 1
      // Predicated region
      $region13: #{_forward.1} parent=11 // pred_check
        %p118 = pneg %p56
      $region14: #{_forward.1} parent=11 // pred_check_branch
        %120 = sbr.rel (%p118) target = $region16
      $region15: #{_forward.1} parent=11 // pred_region
        _
      $region16: #{_forward.1} parent=11 // pred_fallthru
        _
      // Predicated region
      $region17: #{_forward.1} parent=11 // pred_check
        %p121 = pneg %p77
      $region18: #{_forward.1} parent=11 // pred_check_branch
        %123 = sbr.rel (%p121) target = $region20
      $region19: #{_forward.1} parent=11 // pred_region
        _
      $region20: #{_forward.1} parent=11 // pred_fallthru
        _
    $region12: #{_forward.1} parent=5 // pred_fallthru
      _
    %p124 = scmp.lt.s32.totalorder %s9, 4
    // Predicated region
    $region21: #{_forward.1} parent=5 // pred_check
      %p125 = pneg %p124
    $region22: #{_forward.1} parent=5 // pred_check_branch
      %127 = sbr.rel (%p125) target = $region24
    $region23: #{_forward.1} parent=5 // pred_region
      // Predicated region
      $region25: #{_forward.1} parent=23 // pred_check
        %p128 = pneg %p29
      $region26: #{_forward.1} parent=23 // pred_check_branch
        %130 = sbr.rel (%p128) target = $region28
      $region27: #{_forward.1} parent=23 // pred_region
        %s131 = smul.u32 64, %s9
        %p132 = scmp.lt.s32.totalorder %s131, 255
        %s133 = scalar_select %p132, %s131, 255
        %s134 = smul.addr %s133, 8
        %s135 = scalar_lea.vmem %s0, %s134
        %s136 = smul.u32 64, %s9
      $region28: #{_forward.1} parent=23 // pred_fallthru
        _
    $region24: #{_forward.1} parent=5 // pred_fallthru
      _
    %p137 = scmp.le.s32.totalorder 1, %s9
    %p138 = scmp.lt.s32.totalorder %s9, 5
    %p139 = pnand %p137, %p138
    %p140 = pneg %p139
    // Predicated region
    $region29: #{_forward.1} parent=5 // pred_check
      _
    $region30: #{_forward.1} parent=5 // pred_check_branch
      %142 = sbr.rel (%p139) target = $region32
    $region31: #{_forward.1} parent=5 // pred_region
      %s143 = ssub.s32 %s9, 1
      %s144 = smul.u32 64, %s14
      %p145 = scmp.lt.s32.totalorder %s144, 255
      %s146 = scalar_select %p145, %s144, 255
      %s147 = smul.addr %s146, 8
      %s148 = scalar_lea.vmem %s0, %s147
      %p149 = pneg %p35
      %p150 = pneg %p32
      %p151 = pneg %p56
      %p152 = pneg %p53
      %p153 = pneg %p77
      %p154 = pneg %p74
      %p155 = pneg %p103
      %p156 = pneg %p100
      %s157 = smul.u32 64, %s14
      %p158 = scmp.lt.s32.totalorder %s157, 255
      %s159 = scalar_select %p158, %s157, 255
      %s160 = smul.addr %s159, 8
      %s161 = scalar_lea.vmem %s3, %s160
      %s162 = smul.u32 64, %s14
      %p163 = scmp.lt.s32.totalorder %s162, 255
      %s164 = scalar_select %p163, %s162, 255
      %s165 = smul.addr %s164, 8
      %s166 = scalar_lea.vmem %s0, %s165
      %s167 = smul.u32 64, %s14
      %s168 = smul.u32 64, %s14
      %p169 = scmp.lt.s32.totalorder %s168, 255
      %s170 = scalar_select %p169, %s168, 255
      %s171 = smul.addr %s170, 8
      %s172 = scalar_lea.vmem %s3, %s171
      %s173 = smul.u32 64, %s14
      %v175 = vld [vmem:[%s166] sm:$0xff]
      %v176 = vld [vmem:[%s166 + $0x8] sm:$0xff]
      %v177 = vld [vmem:[%s166 + $0x10] sm:$0xff]
      %v178 = vld [vmem:[%s166 + $0x18] sm:$0xff]
      %v179 = vld [vmem:[%s166 + $0x20] sm:$0xff]
      %v180 = vld [vmem:[%s166 + $0x28] sm:$0xff]
      %v181 = vld [vmem:[%s166 + $0x30] sm:$0xff]
      %v182 = vld [vmem:[%s166 + $0x38] sm:$0xff]
      %v183 = vld [vmem:[%s166 + $0x40] sm:$0xff]
      %v184 = vld [vmem:[%s166 + $0x48] sm:$0xff]
      %v185 = vld [vmem:[%s166 + $0x50] sm:$0xff]
      %v186 = vld [vmem:[%s166 + $0x58] sm:$0xff]
      %v187 = vld [vmem:[%s166 + $0x60] sm:$0xff]
      %v188 = vld [vmem:[%s166 + $0x68] sm:$0xff]
      %v189 = vld [vmem:[%s166 + $0x70] sm:$0xff]
      %v190 = vld [vmem:[%s166 + $0x78] sm:$0xff]
      %v191 = vld [vmem:[%s166 + $0x80] sm:$0xff]
      %v192 = vld [vmem:[%s166 + $0x88] sm:$0xff]
      %v193 = vld [vmem:[%s166 + $0x90] sm:$0xff]
      %v194 = vld [vmem:[%s166 + $0x98] sm:$0xff]
      %v195 = vld [vmem:[%s166 + $0xa0] sm:$0xff]
      %v196 = vld [vmem:[%s166 + $0xa8] sm:$0xff]
      %v197 = vld [vmem:[%s166 + $0xb0] sm:$0xff]
      %v198 = vld [vmem:[%s166 + $0xb8] sm:$0xff]
      %v199 = vld [vmem:[%s166 + $0xc0] sm:$0xff]
      %v200 = vld [vmem:[%s166 + $0xc8] sm:$0xff]
      %v201 = vld [vmem:[%s166 + $0xd0] sm:$0xff]
      %v202 = vld [vmem:[%s166 + $0xd8] sm:$0xff]
      %v203 = vld [vmem:[%s166 + $0xe0] sm:$0xff]
      %v204 = vld [vmem:[%s166 + $0xe8] sm:$0xff]
      %v205 = vld [vmem:[%s166 + $0xf0] sm:$0xff]
      %v206 = vld [vmem:[%s166 + $0xf8] sm:$0xff]
      %v207 = vld [vmem:[%s166 + $0x100] sm:$0xff]
      %v208 = vld [vmem:[%s166 + $0x108] sm:$0xff]
      %v209 = vld [vmem:[%s166 + $0x110] sm:$0xff]
      %v210 = vld [vmem:[%s166 + $0x118] sm:$0xff]
      %v211 = vld [vmem:[%s166 + $0x120] sm:$0xff]
      %v212 = vld [vmem:[%s166 + $0x128] sm:$0xff]
      %v213 = vld [vmem:[%s166 + $0x130] sm:$0xff]
      %v214 = vld [vmem:[%s166 + $0x138] sm:$0xff]
      %v215 = vld [vmem:[%s166 + $0x140] sm:$0xff]
      %v216 = vld [vmem:[%s166 + $0x148] sm:$0xff]
      %v217 = vld [vmem:[%s166 + $0x150] sm:$0xff]
      %v218 = vld [vmem:[%s166 + $0x158] sm:$0xff]
      %v219 = vld [vmem:[%s166 + $0x160] sm:$0xff]
      %v220 = vld [vmem:[%s166 + $0x168] sm:$0xff]
      %v221 = vld [vmem:[%s166 + $0x170] sm:$0xff]
      %v222 = vld [vmem:[%s166 + $0x178] sm:$0xff]
      %v223 = vld [vmem:[%s166 + $0x180] sm:$0xff]
      %v224 = vld [vmem:[%s166 + $0x188] sm:$0xff]
      %v225 = vld [vmem:[%s166 + $0x190] sm:$0xff]
      %v226 = vld [vmem:[%s166 + $0x198] sm:$0xff]
      %v227 = vld [vmem:[%s166 + $0x1a0] sm:$0xff]
      %v228 = vld [vmem:[%s166 + $0x1a8] sm:$0xff]
      %v229 = vld [vmem:[%s166 + $0x1b0] sm:$0xff]
      %v230 = vld [vmem:[%s166 + $0x1b8] sm:$0xff]
      %v231 = vld [vmem:[%s166 + $0x1c0] sm:$0xff]
      %v232 = vld [vmem:[%s166 + $0x1c8] sm:$0xff]
      %v233 = vld [vmem:[%s166 + $0x1d0] sm:$0xff]
      %v234 = vld [vmem:[%s166 + $0x1d8] sm:$0xff]
      %v235 = vld [vmem:[%s166 + $0x1e0] sm:$0xff]
      %v236 = vld [vmem:[%s166 + $0x1e8] sm:$0xff]
      %v237 = vld [vmem:[%s166 + $0x1f0] sm:$0xff]
      %v238 = vld [vmem:[%s166 + $0x1f8] sm:$0xff]
      %v239 = vld [vmem:[%s1] sm:$0xf]
      %v240 = vld [vmem:[%s1 + $0x4] sm:$0xf]
      %v241 = vld [vmem:[%s1 + $0x8] sm:$0xf]
      %v242 = vld [vmem:[%s1 + $0xc] sm:$0xf]
      %v243 = vld [vmem:[%s2] sm:$0x1]
      %v244 = vpack.c.bf16 %v176, %v175
      %v245 = vpack.c.bf16 %v178, %v177
      %v246 = vpack.c.bf16 %v180, %v179
      %v247 = vpack.c.bf16 %v182, %v181
      %v248 = vpack.c.bf16 %v184, %v183
      %v249 = vpack.c.bf16 %v186, %v185
      %v250 = vpack.c.bf16 %v188, %v187
      %v251 = vpack.c.bf16 %v190, %v189
      %v252 = vpack.c.bf16 %v192, %v191
      %v253 = vpack.c.bf16 %v194, %v193
      %v254 = vpack.c.bf16 %v196, %v195
      %v255 = vpack.c.bf16 %v198, %v197
      %v256 = vpack.c.bf16 %v200, %v199
      %v257 = vpack.c.bf16 %v202, %v201
      %v258 = vpack.c.bf16 %v204, %v203
      %v259 = vpack.c.bf16 %v206, %v205
      %v260 = vpack.c.bf16 %v208, %v207
      %v261 = vpack.c.bf16 %v210, %v209
      %v262 = vpack.c.bf16 %v212, %v211
      %v263 = vpack.c.bf16 %v214, %v213
      %v264 = vpack.c.bf16 %v216, %v215
      %v265 = vpack.c.bf16 %v218, %v217
      %v266 = vpack.c.bf16 %v220, %v219
      %v267 = vpack.c.bf16 %v222, %v221
      %v268 = vpack.c.bf16 %v224, %v223
      %v269 = vpack.c.bf16 %v226, %v225
      %v270 = vpack.c.bf16 %v228, %v227
      %v271 = vpack.c.bf16 %v230, %v229
      %v272 = vpack.c.bf16 %v232, %v231
      %v273 = vpack.c.bf16 %v234, %v233
      %v274 = vpack.c.bf16 %v236, %v235
      %v275 = vpack.c.bf16 %v238, %v237
      %v277 = vlaneseq
      %v278 = vshrl.u32 %v277, 7
      %v279 = vsub.s32 0, %v278
      %v280 = vrot.slane %v243, %v279
      %v286 = vunpack.c.l.b16 %v239
      %v287 = vunpack.c.l.b16 %v240
      %v288 = vunpack.c.l.b16 %v241
      %v289 = vunpack.c.l.b16 %v242
      %v290 = vpack.c.b16 %v287, %v286
      %v291 = vpack.c.b16 %v289, %v288
      %vm294 = vcmask 261120
      %v296 = vsel %vm294, %v244, 0
      %v299 = vsel %vm294, %v245, 0
      %v302 = vsel %vm294, %v246, 0
      %v305 = vsel %vm294, %v247, 0
      %v308 = vsel %vm294, %v248, 0
      %v311 = vsel %vm294, %v249, 0
      %v314 = vsel %vm294, %v250, 0
      %v317 = vsel %vm294, %v251, 0
      %v320 = vsel %vm294, %v252, 0
      %v323 = vsel %vm294, %v253, 0
      %v326 = vsel %vm294, %v254, 0
      %v329 = vsel %vm294, %v255, 0
      %v332 = vsel %vm294, %v256, 0
      %v335 = vsel %vm294, %v257, 0
      %v338 = vsel %vm294, %v258, 0
      %v341 = vsel %vm294, %v259, 0
      %v344 = vsel %vm294, %v260, 0
      %v347 = vsel %vm294, %v261, 0
      %v350 = vsel %vm294, %v262, 0
      %v353 = vsel %vm294, %v263, 0
      %v356 = vsel %vm294, %v264, 0
      %v359 = vsel %vm294, %v265, 0
      %v362 = vsel %vm294, %v266, 0
      %v365 = vsel %vm294, %v267, 0
      %v368 = vsel %vm294, %v268, 0
      %v371 = vsel %vm294, %v269, 0
      %v374 = vsel %vm294, %v270, 0
      %v377 = vsel %vm294, %v271, 0
      %v380 = vsel %vm294, %v272, 0
      %v383 = vsel %vm294, %v273, 0
      %v386 = vsel %vm294, %v274, 0
      %v389 = vsel %vm294, %v275, 0
      %391 = vmatprep.subr.bf16.mxu0 0
      %392 = vmatpush1.bf16.msra.mxu0 %v290
      %393 = vmatprep.subr.bf16.mxu0 0
      %394 = vmatpush1.bf16.msra.mxu0 %v291
      %395 = vmatprep.subr.bf16.mxu0 0
      %396 = vmatpush1.bf16.msra.mxu0 0
      %397 = vmatprep.subr.bf16.mxu0 0
      %398 = vmatpush1.bf16.msra.mxu0 0
      %399 = vmatprep.subr.bf16.mxu0 0
      %400 = vmatpush1.bf16.msra.mxu0 0
      %401 = vmatprep.subr.bf16.mxu0 0
      %402 = vmatpush1.bf16.msra.mxu0 0
      %403 = vmatprep.subr.bf16.mxu0 0
      %404 = vmatpush1.bf16.msra.mxu0 0
      %405 = vmatprep.subr.bf16.mxu0 0
      %406 = vmatpush1.bf16.msra.mxu0 0
      %407 = vmatprep.subr.bf16.mxu0 0
      %408 = vmatpush1.bf16.msra.mxu0 0
      %409 = vmatprep.subr.bf16.mxu0 0
      %410 = vmatpush1.bf16.msra.mxu0 0
      %411 = vmatprep.subr.bf16.mxu0 0
      %412 = vmatpush1.bf16.msra.mxu0 0
      %413 = vmatprep.subr.bf16.mxu0 0
      %414 = vmatpush1.bf16.msra.mxu0 0
      %415 = vmatprep.subr.bf16.mxu0 0
      %416 = vmatpush1.bf16.msra.mxu0 0
      %417 = vmatprep.subr.bf16.mxu0 0
      %418 = vmatpush1.bf16.msra.mxu0 0
      %419 = vmatprep.subr.bf16.mxu0 0
      %420 = vmatpush1.bf16.msra.mxu0 0
      %421 = vmatprep.subr.bf16.mxu0 0
      %422 = vmatpush1.bf16.msra.mxu0 0
      %423 = vmatprep.mubr.bf16.mxu0 0
      %424 = vmatmul.mubr.bf16.gmra.mrb[0].mxu0 %v296
      %v425 = vpop.f32.mrb[0].mxu0
      %v426 = vadd.f32 %v280, %v425
      %v427 = vpop.f32.mrb[0].mxu0
      %v428 = vpop.f32.mrb[0].mxu0
      %v429 = vadd.f32 %v280, %v428
      %v430 = vpop.f32.mrb[0].mxu0
      %431 = vmatprep.mubr.bf16.mxu0 0
      %432 = vmatmul.mubr.bf16.gmra.mrb[0].mxu0 %v299
      %v433 = vpop.f32.mrb[0].mxu0
      %v434 = vadd.f32 %v280, %v433
      %v435 = vpop.f32.mrb[0].mxu0
      %v436 = vpop.f32.mrb[0].mxu0
      %v437 = vadd.f32 %v280, %v436
      %v438 = vpop.f32.mrb[0].mxu0
      %439 = vmatprep.mubr.bf16.mxu0 0
      %440 = vmatmul.mubr.bf16.gmra.mrb[0].mxu0 %v302
      %v441 = vpop.f32.mrb[0].mxu0
      %v442 = vadd.f32 %v280, %v441
      %v443 = vpop.f32.mrb[0].mxu0
      %v444 = vpop.f32.mrb[0].mxu0
      %v445 = vadd.f32 %v280, %v444
      %v446 = vpop.f32.mrb[0].mxu0
      %447 = vmatprep.mubr.bf16.mxu0 0
      %448 = vmatmul.mubr.bf16.gmra.mrb[0].mxu0 %v305
      %v449 = vpop.f32.mrb[0].mxu0
      %v450 = vadd.f32 %v280, %v449
      %v451 = vpop.f32.mrb[0].mxu0
      %v452 = vpop.f32.mrb[0].mxu0
      %v453 = vadd.f32 %v280, %v452
      %v454 = vpop.f32.mrb[0].mxu0
      %455 = vmatprep.mubr.bf16.mxu0 0
      %456 = vmatmul.mubr.bf16.gmra.mrb[0].mxu0 %v308
      %v457 = vpop.f32.mrb[0].mxu0
      %v458 = vadd.f32 %v280, %v457
      %v459 = vpop.f32.mrb[0].mxu0
      %v460 = vpop.f32.mrb[0].mxu0
      %v461 = vadd.f32 %v280, %v460
      %v462 = vpop.f32.mrb[0].mxu0
      %463 = vmatprep.mubr.bf16.mxu0 0
      %464 = vmatmul.mubr.bf16.gmra.mrb[0].mxu0 %v311
      %v465 = vpop.f32.mrb[0].mxu0
      %v466 = vadd.f32 %v280, %v465
      %v467 = vpop.f32.mrb[0].mxu0
      %v468 = vpop.f32.mrb[0].mxu0
      %v469 = vadd.f32 %v280, %v468
      %v470 = vpop.f32.mrb[0].mxu0
      %471 = vmatprep.mubr.bf16.mxu0 0
      %472 = vmatmul.mubr.bf16.gmra.mrb[0].mxu0 %v314
      %v473 = vpop.f32.mrb[0].mxu0
      %v474 = vadd.f32 %v280, %v473
      %v475 = vpop.f32.mrb[0].mxu0
      %v476 = vpop.f32.mrb[0].mxu0
      %v477 = vadd.f32 %v280, %v476
      %v478 = vpop.f32.mrb[0].mxu0
      %479 = vmatprep.mubr.bf16.mxu0 0
      %480 = vmatmul.mubr.bf16.gmra.mrb[0].mxu0 %v317
      %v481 = vpop.f32.mrb[0].mxu0
      %v482 = vadd.f32 %v280, %v481
      %v483 = vpop.f32.mrb[0].mxu0
      %v484 = vpop.f32.mrb[0].mxu0
      %v485 = vadd.f32 %v280, %v484
      %v486 = vpop.f32.mrb[0].mxu0
      %487 = vmatprep.mubr.bf16.mxu0 0
      %488 = vmatmul.mubr.bf16.gmra.mrb[0].mxu0 %v320
      %v489 = vpop.f32.mrb[0].mxu0
      %v490 = vadd.f32 %v280, %v489
      %v491 = vpop.f32.mrb[0].mxu0
      %v492 = vpop.f32.mrb[0].mxu0
      %v493 = vadd.f32 %v280, %v492
      %v494 = vpop.f32.mrb[0].mxu0
      %495 = vmatprep.mubr.bf16.mxu0 0
      %496 = vmatmul.mubr.bf16.gmra.mrb[0].mxu0 %v323
      %v497 = vpop.f32.mrb[0].mxu0
      %v498 = vadd.f32 %v280, %v497
      %v499 = vpop.f32.mrb[0].mxu0
      %v500 = vpop.f32.mrb[0].mxu0
      %v501 = vadd.f32 %v280, %v500
      %v502 = vpop.f32.mrb[0].mxu0
      %503 = vmatprep.mubr.bf16.mxu0 0
      %504 = vmatmul.mubr.bf16.gmra.mrb[0].mxu0 %v326
      %v505 = vpop.f32.mrb[0].mxu0
      %v506 = vadd.f32 %v280, %v505
      %v507 = vpop.f32.mrb[0].mxu0
      %v508 = vpop.f32.mrb[0].mxu0
      %v509 = vadd.f32 %v280, %v508
      %v510 = vpop.f32.mrb[0].mxu0
      %511 = vmatprep.mubr.bf16.mxu0 0
      %512 = vmatmul.mubr.bf16.gmra.mrb[0].mxu0 %v329
      %v513 = vpop.f32.mrb[0].mxu0
      %v514 = vadd.f32 %v280, %v513
      %v515 = vpop.f32.mrb[0].mxu0
      %v516 = vpop.f32.mrb[0].mxu0
      %v517 = vadd.f32 %v280, %v516
      %v518 = vpop.f32.mrb[0].mxu0
      %519 = vmatprep.mubr.bf16.mxu0 0
      %520 = vmatmul.mubr.bf16.gmra.mrb[0].mxu0 %v332
      %v521 = vpop.f32.mrb[0].mxu0
      %v522 = vadd.f32 %v280, %v521
      %v523 = vpop.f32.mrb[0].mxu0
      %v524 = vpop.f32.mrb[0].mxu0
      %v525 = vadd.f32 %v280, %v524
      %v526 = vpop.f32.mrb[0].mxu0
      %527 = vmatprep.mubr.bf16.mxu0 0
      %528 = vmatmul.mubr.bf16.gmra.mrb[0].mxu0 %v335
      %v529 = vpop.f32.mrb[0].mxu0
      %v530 = vadd.f32 %v280, %v529
      %v531 = vpop.f32.mrb[0].mxu0
      %v532 = vpop.f32.mrb[0].mxu0
      %v533 = vadd.f32 %v280, %v532
      %v534 = vpop.f32.mrb[0].mxu0
      %535 = vmatprep.mubr.bf16.mxu0 0
      %536 = vmatmul.mubr.bf16.gmra.mrb[0].mxu0 %v338
      %v537 = vpop.f32.mrb[0].mxu0
      %v538 = vadd.f32 %v280, %v537
      %v539 = vpop.f32.mrb[0].mxu0
      %v540 = vpop.f32.mrb[0].mxu0
      %v541 = vadd.f32 %v280, %v540
      %v542 = vpop.f32.mrb[0].mxu0
      %543 = vmatprep.mubr.bf16.mxu0 0
      %544 = vmatmul.mubr.bf16.gmra.mrb[0].mxu0 %v341
      %v545 = vpop.f32.mrb[0].mxu0
      %v546 = vadd.f32 %v280, %v545
      %v547 = vpop.f32.mrb[0].mxu0
      %v548 = vpop.f32.mrb[0].mxu0
      %v549 = vadd.f32 %v280, %v548
      %v550 = vpop.f32.mrb[0].mxu0
      %551 = vmatprep.mubr.bf16.mxu0 0
      %552 = vmatmul.mubr.bf16.gmra.mrb[0].mxu0 %v344
      %v553 = vpop.f32.mrb[0].mxu0
      %v554 = vadd.f32 %v280, %v553
      %v555 = vpop.f32.mrb[0].mxu0
      %v556 = vpop.f32.mrb[0].mxu0
      %v557 = vadd.f32 %v280, %v556
      %v558 = vpop.f32.mrb[0].mxu0
      %559 = vmatprep.mubr.bf16.mxu0 0
      %560 = vmatmul.mubr.bf16.gmra.mrb[0].mxu0 %v347
      %v561 = vpop.f32.mrb[0].mxu0
      %v562 = vadd.f32 %v280, %v561
      %v563 = vpop.f32.mrb[0].mxu0
      %v564 = vpop.f32.mrb[0].mxu0
      %v565 = vadd.f32 %v280, %v564
      %v566 = vpop.f32.mrb[0].mxu0
      %567 = vmatprep.mubr.bf16.mxu0 0
      %568 = vmatmul.mubr.bf16.gmra.mrb[0].mxu0 %v350
      %v569 = vpop.f32.mrb[0].mxu0
      %v570 = vadd.f32 %v280, %v569
      %v571 = vpop.f32.mrb[0].mxu0
      %v572 = vpop.f32.mrb[0].mxu0
      %v573 = vadd.f32 %v280, %v572
      %v574 = vpop.f32.mrb[0].mxu0
      %575 = vmatprep.mubr.bf16.mxu0 0
      %576 = vmatmul.mubr.bf16.gmra.mrb[0].mxu0 %v353
      %v577 = vpop.f32.mrb[0].mxu0
      %v578 = vadd.f32 %v280, %v577
      %v579 = vpop.f32.mrb[0].mxu0
      %v580 = vpop.f32.mrb[0].mxu0
      %v581 = vadd.f32 %v280, %v580
      %v582 = vpop.f32.mrb[0].mxu0
      %583 = vmatprep.mubr.bf16.mxu0 0
      %584 = vmatmul.mubr.bf16.gmra.mrb[0].mxu0 %v356
      %v585 = vpop.f32.mrb[0].mxu0
      %v586 = vadd.f32 %v280, %v585
      %v587 = vpop.f32.mrb[0].mxu0
      %v588 = vpop.f32.mrb[0].mxu0
      %v589 = vadd.f32 %v280, %v588
      %v590 = vpop.f32.mrb[0].mxu0
      %591 = vmatprep.mubr.bf16.mxu0 0
      %592 = vmatmul.mubr.bf16.gmra.mrb[0].mxu0 %v359
      %v593 = vpop.f32.mrb[0].mxu0
      %v594 = vadd.f32 %v280, %v593
      %v595 = vpop.f32.mrb[0].mxu0
      %v596 = vpop.f32.mrb[0].mxu0
      %v597 = vadd.f32 %v280, %v596
      %v598 = vpop.f32.mrb[0].mxu0
      %599 = vmatprep.mubr.bf16.mxu0 0
      %600 = vmatmul.mubr.bf16.gmra.mrb[0].mxu0 %v362
      %v601 = vpop.f32.mrb[0].mxu0
      %v602 = vadd.f32 %v280, %v601
      %v603 = vpop.f32.mrb[0].mxu0
      %v604 = vpop.f32.mrb[0].mxu0
      %v605 = vadd.f32 %v280, %v604
      %v606 = vpop.f32.mrb[0].mxu0
      %607 = vmatprep.mubr.bf16.mxu0 0
      %608 = vmatmul.mubr.bf16.gmra.mrb[0].mxu0 %v365
      %v609 = vpop.f32.mrb[0].mxu0
      %v610 = vadd.f32 %v280, %v609
      %v611 = vpop.f32.mrb[0].mxu0
      %v612 = vpop.f32.mrb[0].mxu0
      %v613 = vadd.f32 %v280, %v612
      %v614 = vpop.f32.mrb[0].mxu0
      %615 = vmatprep.mubr.bf16.mxu0 0
      %616 = vmatmul.mubr.bf16.gmra.mrb[0].mxu0 %v368
      %v617 = vpop.f32.mrb[0].mxu0
      %v618 = vadd.f32 %v280, %v617
      %v619 = vpop.f32.mrb[0].mxu0
      %v620 = vpop.f32.mrb[0].mxu0
      %v621 = vadd.f32 %v280, %v620
      %v622 = vpop.f32.mrb[0].mxu0
      %623 = vmatprep.mubr.bf16.mxu0 0
      %624 = vmatmul.mubr.bf16.gmra.mrb[0].mxu0 %v371
      %v625 = vpop.f32.mrb[0].mxu0
      %v626 = vadd.f32 %v280, %v625
      %v627 = vpop.f32.mrb[0].mxu0
      %v628 = vpop.f32.mrb[0].mxu0
      %v629 = vadd.f32 %v280, %v628
      %v630 = vpop.f32.mrb[0].mxu0
      %631 = vmatprep.mubr.bf16.mxu0 0
      %632 = vmatmul.mubr.bf16.gmra.mrb[0].mxu0 %v374
      %v633 = vpop.f32.mrb[0].mxu0
      %v634 = vadd.f32 %v280, %v633
      %v635 = vpop.f32.mrb[0].mxu0
      %v636 = vpop.f32.mrb[0].mxu0
      %v637 = vadd.f32 %v280, %v636
      %v638 = vpop.f32.mrb[0].mxu0
      %639 = vmatprep.mubr.bf16.mxu0 0
      %640 = vmatmul.mubr.bf16.gmra.mrb[0].mxu0 %v377
      %v641 = vpop.f32.mrb[0].mxu0
      %v642 = vadd.f32 %v280, %v641
      %v643 = vpop.f32.mrb[0].mxu0
      %v644 = vpop.f32.mrb[0].mxu0
      %v645 = vadd.f32 %v280, %v644
      %v646 = vpop.f32.mrb[0].mxu0
      %647 = vmatprep.mubr.bf16.mxu0 0
      %648 = vmatmul.mubr.bf16.gmra.mrb[0].mxu0 %v380
      %v649 = vpop.f32.mrb[0].mxu0
      %v650 = vadd.f32 %v280, %v649
      %v651 = vpop.f32.mrb[0].mxu0
      %v652 = vpop.f32.mrb[0].mxu0
      %v653 = vadd.f32 %v280, %v652
      %v654 = vpop.f32.mrb[0].mxu0
      %655 = vmatprep.mubr.bf16.mxu0 0
      %656 = vmatmul.mubr.bf16.gmra.mrb[0].mxu0 %v383
      %v657 = vpop.f32.mrb[0].mxu0
      %v658 = vadd.f32 %v280, %v657
      %v659 = vpop.f32.mrb[0].mxu0
      %v660 = vpop.f32.mrb[0].mxu0
      %v661 = vadd.f32 %v280, %v660
      %v662 = vpop.f32.mrb[0].mxu0
      %663 = vmatprep.mubr.bf16.mxu0 0
      %664 = vmatmul.mubr.bf16.gmra.mrb[0].mxu0 %v386
      %v665 = vpop.f32.mrb[0].mxu0
      %v666 = vadd.f32 %v280, %v665
      %v667 = vpop.f32.mrb[0].mxu0
      %v668 = vpop.f32.mrb[0].mxu0
      %v669 = vadd.f32 %v280, %v668
      %v670 = vpop.f32.mrb[0].mxu0
      %671 = vmatprep.mubr.bf16.mxu0 0
      %672 = vmatmul.mubr.bf16.gmra.mrb[0].mxu0 %v389
      %v673 = vpop.f32.mrb[0].mxu0
      %v674 = vadd.f32 %v280, %v673
      %v675 = vpop.f32.mrb[0].mxu0
      %v676 = vpop.f32.mrb[0].mxu0
      %v677 = vadd.f32 %v280, %v676
      %v678 = vpop.f32.mrb[0].mxu0
      %679 = vdwg.mxu0
      %vm680 = vcmp.ge.f32.partialorder %v426, 0.0
      %vm681 = vcmp.ge.f32.partialorder %v429, 0.0
      %vm682 = vcmp.ge.f32.partialorder %v434, 0.0
      %vm683 = vcmp.ge.f32.partialorder %v437, 0.0
      %vm684 = vcmp.ge.f32.partialorder %v442, 0.0
      %vm685 = vcmp.ge.f32.partialorder %v445, 0.0
      %vm686 = vcmp.ge.f32.partialorder %v450, 0.0
      %vm687 = vcmp.ge.f32.partialorder %v453, 0.0
      %vm688 = vcmp.ge.f32.partialorder %v458, 0.0
      %vm689 = vcmp.ge.f32.partialorder %v461, 0.0
      %vm690 = vcmp.ge.f32.partialorder %v466, 0.0
      %vm691 = vcmp.ge.f32.partialorder %v469, 0.0
      %vm692 = vcmp.ge.f32.partialorder %v474, 0.0
      %vm693 = vcmp.ge.f32.partialorder %v477, 0.0
      %vm694 = vcmp.ge.f32.partialorder %v482, 0.0
      %vm695 = vcmp.ge.f32.partialorder %v485, 0.0
      %vm696 = vcmp.ge.f32.partialorder %v490, 0.0
      %vm697 = vcmp.ge.f32.partialorder %v493, 0.0
      %vm698 = vcmp.ge.f32.partialorder %v498, 0.0
      %vm699 = vcmp.ge.f32.partialorder %v501, 0.0
      %vm700 = vcmp.ge.f32.partialorder %v506, 0.0
      %vm701 = vcmp.ge.f32.partialorder %v509, 0.0
      %vm702 = vcmp.ge.f32.partialorder %v514, 0.0
      %vm703 = vcmp.ge.f32.partialorder %v517, 0.0
      %vm704 = vcmp.ge.f32.partialorder %v522, 0.0
      %vm705 = vcmp.ge.f32.partialorder %v525, 0.0
      %vm706 = vcmp.ge.f32.partialorder %v530, 0.0
      %vm707 = vcmp.ge.f32.partialorder %v533, 0.0
      %vm708 = vcmp.ge.f32.partialorder %v538, 0.0
      %vm709 = vcmp.ge.f32.partialorder %v541, 0.0
      %vm710 = vcmp.ge.f32.partialorder %v546, 0.0
      %vm711 = vcmp.ge.f32.partialorder %v549, 0.0
      %vm712 = vcmp.ge.f32.partialorder %v554, 0.0
      %vm713 = vcmp.ge.f32.partialorder %v557, 0.0
      %vm714 = vcmp.ge.f32.partialorder %v562, 0.0
      %vm715 = vcmp.ge.f32.partialorder %v565, 0.0
      %vm716 = vcmp.ge.f32.partialorder %v570, 0.0
      %vm717 = vcmp.ge.f32.partialorder %v573, 0.0
      %vm718 = vcmp.ge.f32.partialorder %v578, 0.0
      %vm719 = vcmp.ge.f32.partialorder %v581, 0.0
      %vm720 = vcmp.ge.f32.partialorder %v586, 0.0
      %vm721 = vcmp.ge.f32.partialorder %v589, 0.0
      %vm722 = vcmp.ge.f32.partialorder %v594, 0.0
      %vm723 = vcmp.ge.f32.partialorder %v597, 0.0
      %vm724 = vcmp.ge.f32.partialorder %v602, 0.0
      %vm725 = vcmp.ge.f32.partialorder %v605, 0.0
      %vm726 = vcmp.ge.f32.partialorder %v610, 0.0
      %vm727 = vcmp.ge.f32.partialorder %v613, 0.0
      %vm728 = vcmp.ge.f32.partialorder %v618, 0.0
      %vm729 = vcmp.ge.f32.partialorder %v621, 0.0
      %vm730 = vcmp.ge.f32.partialorder %v626, 0.0
      %vm731 = vcmp.ge.f32.partialorder %v629, 0.0
      %vm732 = vcmp.ge.f32.partialorder %v634, 0.0
      %vm733 = vcmp.ge.f32.partialorder %v637, 0.0
      %vm734 = vcmp.ge.f32.partialorder %v642, 0.0
      %vm735 = vcmp.ge.f32.partialorder %v645, 0.0
      %vm736 = vcmp.ge.f32.partialorder %v650, 0.0
      %vm737 = vcmp.ge.f32.partialorder %v653, 0.0
      %vm738 = vcmp.ge.f32.partialorder %v658, 0.0
      %vm739 = vcmp.ge.f32.partialorder %v661, 0.0
      %vm740 = vcmp.ge.f32.partialorder %v666, 0.0
      %vm741 = vcmp.ge.f32.partialorder %v669, 0.0
      %vm742 = vcmp.ge.f32.partialorder %v674, 0.0
      %vm743 = vcmp.ge.f32.partialorder %v677, 0.0
      %v744 = vmul.f32 %v426, 0.01
      %v745 = vmul.f32 %v429, 0.01
      %v746 = vmul.f32 %v434, 0.01
      %v747 = vmul.f32 %v437, 0.01
      %v748 = vmul.f32 %v442, 0.01
      %v749 = vmul.f32 %v445, 0.01
      %v750 = vmul.f32 %v450, 0.01
      %v751 = vmul.f32 %v453, 0.01
      %v752 = vmul.f32 %v458, 0.01
      %v753 = vmul.f32 %v461, 0.01
      %v754 = vmul.f32 %v466, 0.01
      %v755 = vmul.f32 %v469, 0.01
      %v756 = vmul.f32 %v474, 0.01
      %v757 = vmul.f32 %v477, 0.01
      %v758 = vmul.f32 %v482, 0.01
      %v759 = vmul.f32 %v485, 0.01
      %v760 = vmul.f32 %v490, 0.01
      %v761 = vmul.f32 %v493, 0.01
      %v762 = vmul.f32 %v498, 0.01
      %v763 = vmul.f32 %v501, 0.01
      %v764 = vmul.f32 %v506, 0.01
      %v765 = vmul.f32 %v509, 0.01
      %v766 = vmul.f32 %v514, 0.01
      %v767 = vmul.f32 %v517, 0.01
      %v768 = vmul.f32 %v522, 0.01
      %v769 = vmul.f32 %v525, 0.01
      %v770 = vmul.f32 %v530, 0.01
      %v771 = vmul.f32 %v533, 0.01
      %v772 = vmul.f32 %v538, 0.01
      %v773 = vmul.f32 %v541, 0.01
      %v774 = vmul.f32 %v546, 0.01
      %v775 = vmul.f32 %v549, 0.01
      %v776 = vmul.f32 %v554, 0.01
      %v777 = vmul.f32 %v557, 0.01
      %v778 = vmul.f32 %v562, 0.01
      %v779 = vmul.f32 %v565, 0.01
      %v780 = vmul.f32 %v570, 0.01
      %v781 = vmul.f32 %v573, 0.01
      %v782 = vmul.f32 %v578, 0.01
      %v783 = vmul.f32 %v581, 0.01
      %v784 = vmul.f32 %v586, 0.01
      %v785 = vmul.f32 %v589, 0.01
      %v786 = vmul.f32 %v594, 0.01
      %v787 = vmul.f32 %v597, 0.01
      %v788 = vmul.f32 %v602, 0.01
      %v789 = vmul.f32 %v605, 0.01
      %v790 = vmul.f32 %v610, 0.01
      %v791 = vmul.f32 %v613, 0.01
      %v792 = vmul.f32 %v618, 0.01
      %v793 = vmul.f32 %v621, 0.01
      %v794 = vmul.f32 %v626, 0.01
      %v795 = vmul.f32 %v629, 0.01
      %v796 = vmul.f32 %v634, 0.01
      %v797 = vmul.f32 %v637, 0.01
      %v798 = vmul.f32 %v642, 0.01
      %v799 = vmul.f32 %v645, 0.01
      %v800 = vmul.f32 %v650, 0.01
      %v801 = vmul.f32 %v653, 0.01
      %v802 = vmul.f32 %v658, 0.01
      %v803 = vmul.f32 %v661, 0.01
      %v804 = vmul.f32 %v666, 0.01
      %v805 = vmul.f32 %v669, 0.01
      %v806 = vmul.f32 %v674, 0.01
      %v807 = vmul.f32 %v677, 0.01
      %v808 = vsel %vm680, %v426, %v744
      %v809 = vsel %vm681, %v429, %v745
      %v810 = vsel %vm682, %v434, %v746
      %v811 = vsel %vm683, %v437, %v747
      %v812 = vsel %vm684, %v442, %v748
      %v813 = vsel %vm685, %v445, %v749
      %v814 = vsel %vm686, %v450, %v750
      %v815 = vsel %vm687, %v453, %v751
      %v816 = vsel %vm688, %v458, %v752
      %v817 = vsel %vm689, %v461, %v753
      %v818 = vsel %vm690, %v466, %v754
      %v819 = vsel %vm691, %v469, %v755
      %v820 = vsel %vm692, %v474, %v756
      %v821 = vsel %vm693, %v477, %v757
      %v822 = vsel %vm694, %v482, %v758
      %v823 = vsel %vm695, %v485, %v759
      %v824 = vsel %vm696, %v490, %v760
      %v825 = vsel %vm697, %v493, %v761
      %v826 = vsel %vm698, %v498, %v762
      %v827 = vsel %vm699, %v501, %v763
      %v828 = vsel %vm700, %v506, %v764
      %v829 = vsel %vm701, %v509, %v765
      %v830 = vsel %vm702, %v514, %v766
      %v831 = vsel %vm703, %v517, %v767
      %v832 = vsel %vm704, %v522, %v768
      %v833 = vsel %vm705, %v525, %v769
      %v834 = vsel %vm706, %v530, %v770
      %v835 = vsel %vm707, %v533, %v771
      %v836 = vsel %vm708, %v538, %v772
      %v837 = vsel %vm709, %v541, %v773
      %v838 = vsel %vm710, %v546, %v774
      %v839 = vsel %vm711, %v549, %v775
      %v840 = vsel %vm712, %v554, %v776
      %v841 = vsel %vm713, %v557, %v777
      %v842 = vsel %vm714, %v562, %v778
      %v843 = vsel %vm715, %v565, %v779
      %v844 = vsel %vm716, %v570, %v780
      %v845 = vsel %vm717, %v573, %v781
      %v846 = vsel %vm718, %v578, %v782
      %v847 = vsel %vm719, %v581, %v783
      %v848 = vsel %vm720, %v586, %v784
      %v849 = vsel %vm721, %v589, %v785
      %v850 = vsel %vm722, %v594, %v786
      %v851 = vsel %vm723, %v597, %v787
      %v852 = vsel %vm724, %v602, %v788
      %v853 = vsel %vm725, %v605, %v789
      %v854 = vsel %vm726, %v610, %v790
      %v855 = vsel %vm727, %v613, %v791
      %v856 = vsel %vm728, %v618, %v792
      %v857 = vsel %vm729, %v621, %v793
      %v858 = vsel %vm730, %v626, %v794
      %v859 = vsel %vm731, %v629, %v795
      %v860 = vsel %vm732, %v634, %v796
      %v861 = vsel %vm733, %v637, %v797
      %v862 = vsel %vm734, %v642, %v798
      %v863 = vsel %vm735, %v645, %v799
      %v864 = vsel %vm736, %v650, %v800
      %v865 = vsel %vm737, %v653, %v801
      %v866 = vsel %vm738, %v658, %v802
      %v867 = vsel %vm739, %v661, %v803
      %v868 = vsel %vm740, %v666, %v804
      %v869 = vsel %vm741, %v669, %v805
      %v870 = vsel %vm742, %v674, %v806
      %v871 = vsel %vm743, %v677, %v807
      %s872 = scalar_lea.vmem %s1, 64
      %v873 = vld [vmem:[%s872] sm:$0xf]
      %v874 = vld [vmem:[%s872 + $0x4] sm:$0xf]
      %v875 = vld [vmem:[%s872 + $0x8] sm:$0xf]
      %v876 = vld [vmem:[%s872 + $0xc] sm:$0xf]
      %v877 = vld [vmem:[%s872 + $0x10] sm:$0xf]
      %v878 = vld [vmem:[%s872 + $0x14] sm:$0xf]
      %v879 = vld [vmem:[%s872 + $0x18] sm:$0xf]
      %v880 = vld [vmem:[%s872 + $0x1c] sm:$0xf]
      %v881 = vld [vmem:[%s872 + $0x20] sm:$0xf]
      %v882 = vld [vmem:[%s872 + $0x24] sm:$0xf]
      %v883 = vld [vmem:[%s872 + $0x28] sm:$0xf]
      %v884 = vld [vmem:[%s872 + $0x2c] sm:$0xf]
      %v885 = vld [vmem:[%s872 + $0x30] sm:$0xf]
      %v886 = vld [vmem:[%s872 + $0x34] sm:$0xf]
      %v887 = vld [vmem:[%s872 + $0x38] sm:$0xf]
      %v888 = vld [vmem:[%s872 + $0x3c] sm:$0xf]
      %s889 = scalar_lea.vmem %s2, 1
      %v890 = vld [vmem:[%s889] sm:$0x1]
      %v891 = vpack.c.bf16 %v809, %v808
      %v892 = vpack.c.bf16 %v811, %v810
      %v893 = vpack.c.bf16 %v813, %v812
      %v894 = vpack.c.bf16 %v815, %v814
      %v895 = vpack.c.bf16 %v817, %v816
      %v896 = vpack.c.bf16 %v819, %v818
      %v897 = vpack.c.bf16 %v821, %v820
      %v898 = vpack.c.bf16 %v823, %v822
      %v899 = vpack.c.bf16 %v825, %v824
      %v900 = vpack.c.bf16 %v827, %v826
      %v901 = vpack.c.bf16 %v829, %v828
      %v902 = vpack.c.bf16 %v831, %v830
      %v903 = vpack.c.bf16 %v833, %v832
      %v904 = vpack.c.bf16 %v835, %v834
      %v905 = vpack.c.bf16 %v837, %v836
      %v906 = vpack.c.bf16 %v839, %v838
      %v907 = vpack.c.bf16 %v841, %v840
      %v908 = vpack.c.bf16 %v843, %v842
      %v909 = vpack.c.bf16 %v845, %v844
      %v910 = vpack.c.bf16 %v847, %v846
      %v911 = vpack.c.bf16 %v849, %v848
      %v912 = vpack.c.bf16 %v851, %v850
      %v913 = vpack.c.bf16 %v853, %v852
      %v914 = vpack.c.bf16 %v855, %v854
      %v915 = vpack.c.bf16 %v857, %v856
      %v916 = vpack.c.bf16 %v859, %v858
      %v917 = vpack.c.bf16 %v861, %v860
      %v918 = vpack.c.bf16 %v863, %v862
      %v919 = vpack.c.bf16 %v865, %v864
      %v920 = vpack.c.bf16 %v867, %v866
      %v921 = vpack.c.bf16 %v869, %v868
      %v922 = vpack.c.bf16 %v871, %v870
      %v924 = vlaneseq
      %v925 = vshrl.u32 %v924, 7
      %v926 = vsub.s32 0, %v925
      %v927 = vrot.slane %v890, %v926
      %v945 = vunpack.c.l.b16 %v873
      %v946 = vunpack.c.l.b16 %v874
      %v947 = vunpack.c.l.b16 %v875
      %v948 = vunpack.c.l.b16 %v876
      %v949 = vunpack.c.l.b16 %v877
      %v950 = vunpack.c.l.b16 %v878
      %v951 = vunpack.c.l.b16 %v879
      %v952 = vunpack.c.l.b16 %v880
      %v953 = vunpack.c.l.b16 %v881
      %v954 = vunpack.c.l.b16 %v882
      %v955 = vunpack.c.l.b16 %v883
      %v956 = vunpack.c.l.b16 %v884
      %v957 = vunpack.c.l.b16 %v885
      %v958 = vunpack.c.l.b16 %v886
      %v959 = vunpack.c.l.b16 %v887
      %v960 = vunpack.c.l.b16 %v888
      %v961 = vpack.c.b16 %v946, %v945
      %v962 = vpack.c.b16 %v948, %v947
      %v963 = vpack.c.b16 %v950, %v949
      %v964 = vpack.c.b16 %v952, %v951
      %v965 = vpack.c.b16 %v954, %v953
      %v966 = vpack.c.b16 %v956, %v955
      %v967 = vpack.c.b16 %v958, %v957
      %v968 = vpack.c.b16 %v960, %v959
      %977 = vmatprep.subr.bf16.mxu0 0
      %978 = vmatpush1.bf16.msra.mxu0 %v961
      %979 = vmatprep.subr.bf16.mxu0 0
      %980 = vmatpush1.bf16.msra.mxu0 %v962
      %981 = vmatprep.subr.bf16.mxu0 0
      %982 = vmatpush1.bf16.msra.mxu0 %v963
      %983 = vmatprep.subr.bf16.mxu0 0
      %984 = vmatpush1.bf16.msra.mxu0 %v964
      %985 = vmatprep.subr.bf16.mxu0 0
      %986 = vmatpush1.bf16.msra.mxu0 %v965
      %987 = vmatprep.subr.bf16.mxu0 0
      %988 = vmatpush1.bf16.msra.mxu0 %v966
      %989 = vmatprep.subr.bf16.mxu0 0
      %990 = vmatpush1.bf16.msra.mxu0 %v967
      %991 = vmatprep.subr.bf16.mxu0 0
      %992 = vmatpush1.bf16.msra.mxu0 %v968
      %993 = vmatprep.subr.bf16.mxu0 0
      %994 = vmatpush1.bf16.msra.mxu0 0
      %995 = vmatprep.subr.bf16.mxu0 0
      %996 = vmatpush1.bf16.msra.mxu0 0
      %997 = vmatprep.subr.bf16.mxu0 0
      %998 = vmatpush1.bf16.msra.mxu0 0
      %999 = vmatprep.subr.bf16.mxu0 0
      %1000 = vmatpush1.bf16.msra.mxu0 0
      %1001 = vmatprep.subr.bf16.mxu0 0
      %1002 = vmatpush1.bf16.msra.mxu0 0
      %1003 = vmatprep.subr.bf16.mxu0 0
      %1004 = vmatpush1.bf16.msra.mxu0 0
      %1005 = vmatprep.subr.bf16.mxu0 0
      %1006 = vmatpush1.bf16.msra.mxu0 0
      %1007 = vmatprep.subr.bf16.mxu0 0
      %1008 = vmatpush1.bf16.msra.mxu0 0
      %1009 = vmatprep.mubr.bf16.mxu0 0
      %1010 = vmatmul.mubr.bf16.gmra.mrb[0].mxu0 %v891
      %v1011 = vpop.f32.mrb[0].mxu0
      %v1012 = vadd.f32 %v927, %v1011
      %v1013 = vpop.f32.mrb[0].mxu0
      %v1014 = vpop.f32.mrb[0].mxu0
      %v1015 = vadd.f32 %v927, %v1014
      %v1016 = vpop.f32.mrb[0].mxu0
      %1017 = vmatprep.mubr.bf16.mxu0 0
      %1018 = vmatmul.mubr.bf16.gmra.mrb[0].mxu0 %v892
      %v1019 = vpop.f32.mrb[0].mxu0
      %v1020 = vadd.f32 %v927, %v1019
      %v1021 = vpop.f32.mrb[0].mxu0
      %v1022 = vpop.f32.mrb[0].mxu0
      %v1023 = vadd.f32 %v927, %v1022
      %v1024 = vpop.f32.mrb[0].mxu0
      %1025 = vmatprep.mubr.bf16.mxu0 0
      %1026 = vmatmul.mubr.bf16.gmra.mrb[0].mxu0 %v893
      %v1027 = vpop.f32.mrb[0].mxu0
      %v1028 = vadd.f32 %v927, %v1027
      %v1029 = vpop.f32.mrb[0].mxu0
      %v1030 = vpop.f32.mrb[0].mxu0
      %v1031 = vadd.f32 %v927, %v1030
      %v1032 = vpop.f32.mrb[0].mxu0
      %1033 = vmatprep.mubr.bf16.mxu0 0
      %1034 = vmatmul.mubr.bf16.gmra.mrb[0].mxu0 %v894
      %v1035 = vpop.f32.mrb[0].mxu0
      %v1036 = vadd.f32 %v927, %v1035
      %v1037 = vpop.f32.mrb[0].mxu0
      %v1038 = vpop.f32.mrb[0].mxu0
      %v1039 = vadd.f32 %v927, %v1038
      %v1040 = vpop.f32.mrb[0].mxu0
      %1041 = vmatprep.mubr.bf16.mxu0 0
      %1042 = vmatmul.mubr.bf16.gmra.mrb[0].mxu0 %v895
      %v1043 = vpop.f32.mrb[0].mxu0
      %v1044 = vadd.f32 %v927, %v1043
      %v1045 = vpop.f32.mrb[0].mxu0
      %v1046 = vpop.f32.mrb[0].mxu0
      %v1047 = vadd.f32 %v927, %v1046
      %v1048 = vpop.f32.mrb[0].mxu0
      %1049 = vmatprep.mubr.bf16.mxu0 0
      %1050 = vmatmul.mubr.bf16.gmra.mrb[0].mxu0 %v896
      %v1051 = vpop.f32.mrb[0].mxu0
      %v1052 = vadd.f32 %v927, %v1051
      %v1053 = vpop.f32.mrb[0].mxu0
      %v1054 = vpop.f32.mrb[0].mxu0
      %v1055 = vadd.f32 %v927, %v1054
      %v1056 = vpop.f32.mrb[0].mxu0
      %1057 = vmatprep.mubr.bf16.mxu0 0
      %1058 = vmatmul.mubr.bf16.gmra.mrb[0].mxu0 %v897
      %v1059 = vpop.f32.mrb[0].mxu0
      %v1060 = vadd.f32 %v927, %v1059
      %v1061 = vpop.f32.mrb[0].mxu0
      %v1062 = vpop.f32.mrb[0].mxu0
      %v1063 = vadd.f32 %v927, %v1062
      %v1064 = vpop.f32.mrb[0].mxu0
      %1065 = vmatprep.mubr.bf16.mxu0 0
      %1066 = vmatmul.mubr.bf16.gmra.mrb[0].mxu0 %v898
      %v1067 = vpop.f32.mrb[0].mxu0
      %v1068 = vadd.f32 %v927, %v1067
      %v1069 = vpop.f32.mrb[0].mxu0
      %v1070 = vpop.f32.mrb[0].mxu0
      %v1071 = vadd.f32 %v927, %v1070
      %v1072 = vpop.f32.mrb[0].mxu0
      %1073 = vmatprep.mubr.bf16.mxu0 0
      %1074 = vmatmul.mubr.bf16.gmra.mrb[0].mxu0 %v899
      %v1075 = vpop.f32.mrb[0].mxu0
      %v1076 = vadd.f32 %v927, %v1075
      %v1077 = vpop.f32.mrb[0].mxu0
      %v1078 = vpop.f32.mrb[0].mxu0
      %v1079 = vadd.f32 %v927, %v1078
      %v1080 = vpop.f32.mrb[0].mxu0
      %1081 = vmatprep.mubr.bf16.mxu0 0
      %1082 = vmatmul.mubr.bf16.gmra.mrb[0].mxu0 %v900
      %v1083 = vpop.f32.mrb[0].mxu0
      %v1084 = vadd.f32 %v927, %v1083
      %v1085 = vpop.f32.mrb[0].mxu0
      %v1086 = vpop.f32.mrb[0].mxu0
      %v1087 = vadd.f32 %v927, %v1086
      %v1088 = vpop.f32.mrb[0].mxu0
      %1089 = vmatprep.mubr.bf16.mxu0 0
      %1090 = vmatmul.mubr.bf16.gmra.mrb[0].mxu0 %v901
      %v1091 = vpop.f32.mrb[0].mxu0
      %v1092 = vadd.f32 %v927, %v1091
      %v1093 = vpop.f32.mrb[0].mxu0
      %v1094 = vpop.f32.mrb[0].mxu0
      %v1095 = vadd.f32 %v927, %v1094
      %v1096 = vpop.f32.mrb[0].mxu0
      %1097 = vmatprep.mubr.bf16.mxu0 0
      %1098 = vmatmul.mubr.bf16.gmra.mrb[0].mxu0 %v902
      %v1099 = vpop.f32.mrb[0].mxu0
      %v1100 = vadd.f32 %v927, %v1099
      %v1101 = vpop.f32.mrb[0].mxu0
      %v1102 = vpop.f32.mrb[0].mxu0
      %v1103 = vadd.f32 %v927, %v1102
      %v1104 = vpop.f32.mrb[0].mxu0
      %1105 = vmatprep.mubr.bf16.mxu0 0
      %1106 = vmatmul.mubr.bf16.gmra.mrb[0].mxu0 %v903
      %v1107 = vpop.f32.mrb[0].mxu0
      %v1108 = vadd.f32 %v927, %v1107
      %v1109 = vpop.f32.mrb[0].mxu0
      %v1110 = vpop.f32.mrb[0].mxu0
      %v1111 = vadd.f32 %v927, %v1110
      %v1112 = vpop.f32.mrb[0].mxu0
      %1113 = vmatprep.mubr.bf16.mxu0 0
      %1114 = vmatmul.mubr.bf16.gmra.mrb[0].mxu0 %v904
      %v1115 = vpop.f32.mrb[0].mxu0
      %v1116 = vadd.f32 %v927, %v1115
      %v1117 = vpop.f32.mrb[0].mxu0
      %v1118 = vpop.f32.mrb[0].mxu0
      %v1119 = vadd.f32 %v927, %v1118
      %v1120 = vpop.f32.mrb[0].mxu0
      %1121 = vmatprep.mubr.bf16.mxu0 0
      %1122 = vmatmul.mubr.bf16.gmra.mrb[0].mxu0 %v905
      %v1123 = vpop.f32.mrb[0].mxu0
      %v1124 = vadd.f32 %v927, %v1123
      %v1125 = vpop.f32.mrb[0].mxu0
      %v1126 = vpop.f32.mrb[0].mxu0
      %v1127 = vadd.f32 %v927, %v1126
      %v1128 = vpop.f32.mrb[0].mxu0
      %1129 = vmatprep.mubr.bf16.mxu0 0
      %1130 = vmatmul.mubr.bf16.gmra.mrb[0].mxu0 %v906
      %v1131 = vpop.f32.mrb[0].mxu0
      %v1132 = vadd.f32 %v927, %v1131
      %v1133 = vpop.f32.mrb[0].mxu0
      %v1134 = vpop.f32.mrb[0].mxu0
      %v1135 = vadd.f32 %v927, %v1134
      %v1136 = vpop.f32.mrb[0].mxu0
      %1137 = vmatprep.mubr.bf16.mxu0 0
      %1138 = vmatmul.mubr.bf16.gmra.mrb[0].mxu0 %v907
      %v1139 = vpop.f32.mrb[0].mxu0
      %v1140 = vadd.f32 %v927, %v1139
      %v1141 = vpop.f32.mrb[0].mxu0
      %v1142 = vpop.f32.mrb[0].mxu0
      %v1143 = vadd.f32 %v927, %v1142
      %v1144 = vpop.f32.mrb[0].mxu0
      %1145 = vmatprep.mubr.bf16.mxu0 0
      %1146 = vmatmul.mubr.bf16.gmra.mrb[0].mxu0 %v908
      %v1147 = vpop.f32.mrb[0].mxu0
      %v1148 = vadd.f32 %v927, %v1147
      %v1149 = vpop.f32.mrb[0].mxu0
      %v1150 = vpop.f32.mrb[0].mxu0
      %v1151 = vadd.f32 %v927, %v1150
      %v1152 = vpop.f32.mrb[0].mxu0
      %1153 = vmatprep.mubr.bf16.mxu0 0
      %1154 = vmatmul.mubr.bf16.gmra.mrb[0].mxu0 %v909
      %v1155 = vpop.f32.mrb[0].mxu0
      %v1156 = vadd.f32 %v927, %v1155
      %v1157 = vpop.f32.mrb[0].mxu0
      %v1158 = vpop.f32.mrb[0].mxu0
      %v1159 = vadd.f32 %v927, %v1158
      %v1160 = vpop.f32.mrb[0].mxu0
      %1161 = vmatprep.mubr.bf16.mxu0 0
      %1162 = vmatmul.mubr.bf16.gmra.mrb[0].mxu0 %v910
      %v1163 = vpop.f32.mrb[0].mxu0
      %v1164 = vadd.f32 %v927, %v1163
      %v1165 = vpop.f32.mrb[0].mxu0
      %v1166 = vpop.f32.mrb[0].mxu0
      %v1167 = vadd.f32 %v927, %v1166
      %v1168 = vpop.f32.mrb[0].mxu0
      %1169 = vmatprep.mubr.bf16.mxu0 0
      %1170 = vmatmul.mubr.bf16.gmra.mrb[0].mxu0 %v911
      %v1171 = vpop.f32.mrb[0].mxu0
      %v1172 = vadd.f32 %v927, %v1171
      %v1173 = vpop.f32.mrb[0].mxu0
      %v1174 = vpop.f32.mrb[0].mxu0
      %v1175 = vadd.f32 %v927, %v1174
      %v1176 = vpop.f32.mrb[0].mxu0
      %1177 = vmatprep.mubr.bf16.mxu0 0
      %1178 = vmatmul.mubr.bf16.gmra.mrb[0].mxu0 %v912
      %v1179 = vpop.f32.mrb[0].mxu0
      %v1180 = vadd.f32 %v927, %v1179
      %v1181 = vpop.f32.mrb[0].mxu0
      %v1182 = vpop.f32.mrb[0].mxu0
      %v1183 = vadd.f32 %v927, %v1182
      %v1184 = vpop.f32.mrb[0].mxu0
      %1185 = vmatprep.mubr.bf16.mxu0 0
      %1186 = vmatmul.mubr.bf16.gmra.mrb[0].mxu0 %v913
      %v1187 = vpop.f32.mrb[0].mxu0
      %v1188 = vadd.f32 %v927, %v1187
      %v1189 = vpop.f32.mrb[0].mxu0
      %v1190 = vpop.f32.mrb[0].mxu0
      %v1191 = vadd.f32 %v927, %v1190
      %v1192 = vpop.f32.mrb[0].mxu0
      %1193 = vmatprep.mubr.bf16.mxu0 0
      %1194 = vmatmul.mubr.bf16.gmra.mrb[0].mxu0 %v914
      %v1195 = vpop.f32.mrb[0].mxu0
      %v1196 = vadd.f32 %v927, %v1195
      %v1197 = vpop.f32.mrb[0].mxu0
      %v1198 = vpop.f32.mrb[0].mxu0
      %v1199 = vadd.f32 %v927, %v1198
      %v1200 = vpop.f32.mrb[0].mxu0
      %1201 = vmatprep.mubr.bf16.mxu0 0
      %1202 = vmatmul.mubr.bf16.gmra.mrb[0].mxu0 %v915
      %v1203 = vpop.f32.mrb[0].mxu0
      %v1204 = vadd.f32 %v927, %v1203
      %v1205 = vpop.f32.mrb[0].mxu0
      %v1206 = vpop.f32.mrb[0].mxu0
      %v1207 = vadd.f32 %v927, %v1206
      %v1208 = vpop.f32.mrb[0].mxu0
      %1209 = vmatprep.mubr.bf16.mxu0 0
      %1210 = vmatmul.mubr.bf16.gmra.mrb[0].mxu0 %v916
      %v1211 = vpop.f32.mrb[0].mxu0
      %v1212 = vadd.f32 %v927, %v1211
      %v1213 = vpop.f32.mrb[0].mxu0
      %v1214 = vpop.f32.mrb[0].mxu0
      %v1215 = vadd.f32 %v927, %v1214
      %v1216 = vpop.f32.mrb[0].mxu0
      %1217 = vmatprep.mubr.bf16.mxu0 0
      %1218 = vmatmul.mubr.bf16.gmra.mrb[0].mxu0 %v917
      %v1219 = vpop.f32.mrb[0].mxu0
      %v1220 = vadd.f32 %v927, %v1219
      %v1221 = vpop.f32.mrb[0].mxu0
      %v1222 = vpop.f32.mrb[0].mxu0
      %v1223 = vadd.f32 %v927, %v1222
      %v1224 = vpop.f32.mrb[0].mxu0
      %1225 = vmatprep.mubr.bf16.mxu0 0
      %1226 = vmatmul.mubr.bf16.gmra.mrb[0].mxu0 %v918
      %v1227 = vpop.f32.mrb[0].mxu0
      %v1228 = vadd.f32 %v927, %v1227
      %v1229 = vpop.f32.mrb[0].mxu0
      %v1230 = vpop.f32.mrb[0].mxu0
      %v1231 = vadd.f32 %v927, %v1230
      %v1232 = vpop.f32.mrb[0].mxu0
      %1233 = vmatprep.mubr.bf16.mxu0 0
      %1234 = vmatmul.mubr.bf16.gmra.mrb[0].mxu0 %v919
      %v1235 = vpop.f32.mrb[0].mxu0
      %v1236 = vadd.f32 %v927, %v1235
      %v1237 = vpop.f32.mrb[0].mxu0
      %v1238 = vpop.f32.mrb[0].mxu0
      %v1239 = vadd.f32 %v927, %v1238
      %v1240 = vpop.f32.mrb[0].mxu0
      %1241 = vmatprep.mubr.bf16.mxu0 0
      %1242 = vmatmul.mubr.bf16.gmra.mrb[0].mxu0 %v920
      %v1243 = vpop.f32.mrb[0].mxu0
      %v1244 = vadd.f32 %v927, %v1243
      %v1245 = vpop.f32.mrb[0].mxu0
      %v1246 = vpop.f32.mrb[0].mxu0
      %v1247 = vadd.f32 %v927, %v1246
      %v1248 = vpop.f32.mrb[0].mxu0
      %1249 = vmatprep.mubr.bf16.mxu0 0
      %1250 = vmatmul.mubr.bf16.gmra.mrb[0].mxu0 %v921
      %v1251 = vpop.f32.mrb[0].mxu0
      %v1252 = vadd.f32 %v927, %v1251
      %v1253 = vpop.f32.mrb[0].mxu0
      %v1254 = vpop.f32.mrb[0].mxu0
      %v1255 = vadd.f32 %v927, %v1254
      %v1256 = vpop.f32.mrb[0].mxu0
      %1257 = vmatprep.mubr.bf16.mxu0 0
      %1258 = vmatmul.mubr.bf16.gmra.mrb[0].mxu0 %v922
      %v1259 = vpop.f32.mrb[0].mxu0
      %v1260 = vadd.f32 %v927, %v1259
      %v1261 = vpop.f32.mrb[0].mxu0
      %v1262 = vpop.f32.mrb[0].mxu0
      %v1263 = vadd.f32 %v927, %v1262
      %v1264 = vpop.f32.mrb[0].mxu0
      %1265 = vdwg.mxu0
      %vm1266 = vcmp.ge.f32.partialorder %v1012, 0.0
      %vm1267 = vcmp.ge.f32.partialorder %v1015, 0.0
      %vm1268 = vcmp.ge.f32.partialorder %v1020, 0.0
      %vm1269 = vcmp.ge.f32.partialorder %v1023, 0.0
      %vm1270 = vcmp.ge.f32.partialorder %v1028, 0.0
      %vm1271 = vcmp.ge.f32.partialorder %v1031, 0.0
      %vm1272 = vcmp.ge.f32.partialorder %v1036, 0.0
      %vm1273 = vcmp.ge.f32.partialorder %v1039, 0.0
      %vm1274 = vcmp.ge.f32.partialorder %v1044, 0.0
      %vm1275 = vcmp.ge.f32.partialorder %v1047, 0.0
      %vm1276 = vcmp.ge.f32.partialorder %v1052, 0.0
      %vm1277 = vcmp.ge.f32.partialorder %v1055, 0.0
      %vm1278 = vcmp.ge.f32.partialorder %v1060, 0.0
      %vm1279 = vcmp.ge.f32.partialorder %v1063, 0.0
      %vm1280 = vcmp.ge.f32.partialorder %v1068, 0.0
      %vm1281 = vcmp.ge.f32.partialorder %v1071, 0.0
      %vm1282 = vcmp.ge.f32.partialorder %v1076, 0.0
      %vm1283 = vcmp.ge.f32.partialorder %v1079, 0.0
      %vm1284 = vcmp.ge.f32.partialorder %v1084, 0.0
      %vm1285 = vcmp.ge.f32.partialorder %v1087, 0.0
      %vm1286 = vcmp.ge.f32.partialorder %v1092, 0.0
      %vm1287 = vcmp.ge.f32.partialorder %v1095, 0.0
      %vm1288 = vcmp.ge.f32.partialorder %v1100, 0.0
      %vm1289 = vcmp.ge.f32.partialorder %v1103, 0.0
      %vm1290 = vcmp.ge.f32.partialorder %v1108, 0.0
      %vm1291 = vcmp.ge.f32.partialorder %v1111, 0.0
      %vm1292 = vcmp.ge.f32.partialorder %v1116, 0.0
      %vm1293 = vcmp.ge.f32.partialorder %v1119, 0.0
      %vm1294 = vcmp.ge.f32.partialorder %v1124, 0.0
      %vm1295 = vcmp.ge.f32.partialorder %v1127, 0.0
      %vm1296 = vcmp.ge.f32.partialorder %v1132, 0.0
      %vm1297 = vcmp.ge.f32.partialorder %v1135, 0.0
      %vm1298 = vcmp.ge.f32.partialorder %v1140, 0.0
      %vm1299 = vcmp.ge.f32.partialorder %v1143, 0.0
      %vm1300 = vcmp.ge.f32.partialorder %v1148, 0.0
      %vm1301 = vcmp.ge.f32.partialorder %v1151, 0.0
      %vm1302 = vcmp.ge.f32.partialorder %v1156, 0.0
      %vm1303 = vcmp.ge.f32.partialorder %v1159, 0.0
      %vm1304 = vcmp.ge.f32.partialorder %v1164, 0.0
      %vm1305 = vcmp.ge.f32.partialorder %v1167, 0.0
      %vm1306 = vcmp.ge.f32.partialorder %v1172, 0.0
      %vm1307 = vcmp.ge.f32.partialorder %v1175, 0.0
      %vm1308 = vcmp.ge.f32.partialorder %v1180, 0.0
      %vm1309 = vcmp.ge.f32.partialorder %v1183, 0.0
      %vm1310 = vcmp.ge.f32.partialorder %v1188, 0.0
      %vm1311 = vcmp.ge.f32.partialorder %v1191, 0.0
      %vm1312 = vcmp.ge.f32.partialorder %v1196, 0.0
      %vm1313 = vcmp.ge.f32.partialorder %v1199, 0.0
      %vm1314 = vcmp.ge.f32.partialorder %v1204, 0.0
      %vm1315 = vcmp.ge.f32.partialorder %v1207, 0.0
      %vm1316 = vcmp.ge.f32.partialorder %v1212, 0.0
      %vm1317 = vcmp.ge.f32.partialorder %v1215, 0.0
      %vm1318 = vcmp.ge.f32.partialorder %v1220, 0.0
      %vm1319 = vcmp.ge.f32.partialorder %v1223, 0.0
      %vm1320 = vcmp.ge.f32.partialorder %v1228, 0.0
      %vm1321 = vcmp.ge.f32.partialorder %v1231, 0.0
      %vm1322 = vcmp.ge.f32.partialorder %v1236, 0.0
      %vm1323 = vcmp.ge.f32.partialorder %v1239, 0.0
      %vm1324 = vcmp.ge.f32.partialorder %v1244, 0.0
      %vm1325 = vcmp.ge.f32.partialorder %v1247, 0.0
      %vm1326 = vcmp.ge.f32.partialorder %v1252, 0.0
      %vm1327 = vcmp.ge.f32.partialorder %v1255, 0.0
      %vm1328 = vcmp.ge.f32.partialorder %v1260, 0.0
      %vm1329 = vcmp.ge.f32.partialorder %v1263, 0.0
      %v1330 = vmul.f32 %v1012, 0.01
      %v1331 = vmul.f32 %v1015, 0.01
      %v1332 = vmul.f32 %v1020, 0.01
      %v1333 = vmul.f32 %v1023, 0.01
      %v1334 = vmul.f32 %v1028, 0.01
      %v1335 = vmul.f32 %v1031, 0.01
      %v1336 = vmul.f32 %v1036, 0.01
      %v1337 = vmul.f32 %v1039, 0.01
      %v1338 = vmul.f32 %v1044, 0.01
      %v1339 = vmul.f32 %v1047, 0.01
      %v1340 = vmul.f32 %v1052, 0.01
      %v1341 = vmul.f32 %v1055, 0.01
      %v1342 = vmul.f32 %v1060, 0.01
      %v1343 = vmul.f32 %v1063, 0.01
      %v1344 = vmul.f32 %v1068, 0.01
      %v1345 = vmul.f32 %v1071, 0.01
      %v1346 = vmul.f32 %v1076, 0.01
      %v1347 = vmul.f32 %v1079, 0.01
      %v1348 = vmul.f32 %v1084, 0.01
      %v1349 = vmul.f32 %v1087, 0.01
      %v1350 = vmul.f32 %v1092, 0.01
      %v1351 = vmul.f32 %v1095, 0.01
      %v1352 = vmul.f32 %v1100, 0.01
      %v1353 = vmul.f32 %v1103, 0.01
      %v1354 = vmul.f32 %v1108, 0.01
      %v1355 = vmul.f32 %v1111, 0.01
      %v1356 = vmul.f32 %v1116, 0.01
      %v1357 = vmul.f32 %v1119, 0.01
      %v1358 = vmul.f32 %v1124, 0.01
      %v1359 = vmul.f32 %v1127, 0.01
      %v1360 = vmul.f32 %v1132, 0.01
      %v1361 = vmul.f32 %v1135, 0.01
      %v1362 = vmul.f32 %v1140, 0.01
      %v1363 = vmul.f32 %v1143, 0.01
      %v1364 = vmul.f32 %v1148, 0.01
      %v1365 = vmul.f32 %v1151, 0.01
      %v1366 = vmul.f32 %v1156, 0.01
      %v1367 = vmul.f32 %v1159, 0.01
      %v1368 = vmul.f32 %v1164, 0.01
      %v1369 = vmul.f32 %v1167, 0.01
      %v1370 = vmul.f32 %v1172, 0.01
      %v1371 = vmul.f32 %v1175, 0.01
      %v1372 = vmul.f32 %v1180, 0.01
      %v1373 = vmul.f32 %v1183, 0.01
      %v1374 = vmul.f32 %v1188, 0.01
      %v1375 = vmul.f32 %v1191, 0.01
      %v1376 = vmul.f32 %v1196, 0.01
      %v1377 = vmul.f32 %v1199, 0.01
      %v1378 = vmul.f32 %v1204, 0.01
      %v1379 = vmul.f32 %v1207, 0.01
      %v1380 = vmul.f32 %v1212, 0.01
      %v1381 = vmul.f32 %v1215, 0.01
      %v1382 = vmul.f32 %v1220, 0.01
      %v1383 = vmul.f32 %v1223, 0.01
      %v1384 = vmul.f32 %v1228, 0.01
      %v1385 = vmul.f32 %v1231, 0.01
      %v1386 = vmul.f32 %v1236, 0.01
      %v1387 = vmul.f32 %v1239, 0.01
      %v1388 = vmul.f32 %v1244, 0.01
      %v1389 = vmul.f32 %v1247, 0.01
      %v1390 = vmul.f32 %v1252, 0.01
      %v1391 = vmul.f32 %v1255, 0.01
      %v1392 = vmul.f32 %v1260, 0.01
      %v1393 = vmul.f32 %v1263, 0.01
      %v1394 = vsel %vm1266, %v1012, %v1330
      %v1395 = vsel %vm1267, %v1015, %v1331
      %v1396 = vsel %vm1268, %v1020, %v1332
      %v1397 = vsel %vm1269, %v1023, %v1333
      %v1398 = vsel %vm1270, %v1028, %v1334
      %v1399 = vsel %vm1271, %v1031, %v1335
      %v1400 = vsel %vm1272, %v1036, %v1336
      %v1401 = vsel %vm1273, %v1039, %v1337
      %v1402 = vsel %vm1274, %v1044, %v1338
      %v1403 = vsel %vm1275, %v1047, %v1339
      %v1404 = vsel %vm1276, %v1052, %v1340
      %v1405 = vsel %vm1277, %v1055, %v1341
      %v1406 = vsel %vm1278, %v1060, %v1342
      %v1407 = vsel %vm1279, %v1063, %v1343
      %v1408 = vsel %vm1280, %v1068, %v1344
      %v1409 = vsel %vm1281, %v1071, %v1345
      %v1410 = vsel %vm1282, %v1076, %v1346
      %v1411 = vsel %vm1283, %v1079, %v1347
      %v1412 = vsel %vm1284, %v1084, %v1348
      %v1413 = vsel %vm1285, %v1087, %v1349
      %v1414 = vsel %vm1286, %v1092, %v1350
      %v1415 = vsel %vm1287, %v1095, %v1351
      %v1416 = vsel %vm1288, %v1100, %v1352
      %v1417 = vsel %vm1289, %v1103, %v1353
      %v1418 = vsel %vm1290, %v1108, %v1354
      %v1419 = vsel %vm1291, %v1111, %v1355
      %v1420 = vsel %vm1292, %v1116, %v1356
      %v1421 = vsel %vm1293, %v1119, %v1357
      %v1422 = vsel %vm1294, %v1124, %v1358
      %v1423 = vsel %vm1295, %v1127, %v1359
      %v1424 = vsel %vm1296, %v1132, %v1360
      %v1425 = vsel %vm1297, %v1135, %v1361
      %v1426 = vsel %vm1298, %v1140, %v1362
      %v1427 = vsel %vm1299, %v1143, %v1363
      %v1428 = vsel %vm1300, %v1148, %v1364
      %v1429 = vsel %vm1301, %v1151, %v1365
      %v1430 = vsel %vm1302, %v1156, %v1366
      %v1431 = vsel %vm1303, %v1159, %v1367
      %v1432 = vsel %vm1304, %v1164, %v1368
      %v1433 = vsel %vm1305, %v1167, %v1369
      %v1434 = vsel %vm1306, %v1172, %v1370
      %v1435 = vsel %vm1307, %v1175, %v1371
      %v1436 = vsel %vm1308, %v1180, %v1372
      %v1437 = vsel %vm1309, %v1183, %v1373
      %v1438 = vsel %vm1310, %v1188, %v1374
      %v1439 = vsel %vm1311, %v1191, %v1375
      %v1440 = vsel %vm1312, %v1196, %v1376
      %v1441 = vsel %vm1313, %v1199, %v1377
      %v1442 = vsel %vm1314, %v1204, %v1378
      %v1443 = vsel %vm1315, %v1207, %v1379
      %v1444 = vsel %vm1316, %v1212, %v1380
      %v1445 = vsel %vm1317, %v1215, %v1381
      %v1446 = vsel %vm1318, %v1220, %v1382
      %v1447 = vsel %vm1319, %v1223, %v1383
      %v1448 = vsel %vm1320, %v1228, %v1384
      %v1449 = vsel %vm1321, %v1231, %v1385
      %v1450 = vsel %vm1322, %v1236, %v1386
      %v1451 = vsel %vm1323, %v1239, %v1387
      %v1452 = vsel %vm1324, %v1244, %v1388
      %v1453 = vsel %vm1325, %v1247, %v1389
      %v1454 = vsel %vm1326, %v1252, %v1390
      %v1455 = vsel %vm1327, %v1255, %v1391
      %v1456 = vsel %vm1328, %v1260, %v1392
      %v1457 = vsel %vm1329, %v1263, %v1393
      %s1458 = scalar_lea.vmem %s1, 128
      %v1459 = vld [vmem:[%s1458] sm:$0xf]
      %v1460 = vld [vmem:[%s1458 + $0x4] sm:$0xf]
      %v1461 = vld [vmem:[%s1458 + $0x8] sm:$0xf]
      %v1462 = vld [vmem:[%s1458 + $0xc] sm:$0xf]
      %v1463 = vld [vmem:[%s1458 + $0x10] sm:$0xf]
      %v1464 = vld [vmem:[%s1458 + $0x14] sm:$0xf]
      %v1465 = vld [vmem:[%s1458 + $0x18] sm:$0xf]
      %v1466 = vld [vmem:[%s1458 + $0x1c] sm:$0xf]
      %v1467 = vld [vmem:[%s1458 + $0x20] sm:$0xf]
      %v1468 = vld [vmem:[%s1458 + $0x24] sm:$0xf]
      %v1469 = vld [vmem:[%s1458 + $0x28] sm:$0xf]
      %v1470 = vld [vmem:[%s1458 + $0x2c] sm:$0xf]
      %v1471 = vld [vmem:[%s1458 + $0x30] sm:$0xf]
      %v1472 = vld [vmem:[%s1458 + $0x34] sm:$0xf]
      %v1473 = vld [vmem:[%s1458 + $0x38] sm:$0xf]
      %v1474 = vld [vmem:[%s1458 + $0x3c] sm:$0xf]
      %s1475 = scalar_lea.vmem %s2, 2
      %v1476 = vld [vmem:[%s1475] sm:$0x1]
      %v1477 = vpack.c.bf16 %v1395, %v1394
      %v1478 = vpack.c.bf16 %v1397, %v1396
      %v1479 = vpack.c.bf16 %v1399, %v1398
      %v1480 = vpack.c.bf16 %v1401, %v1400
      %v1481 = vpack.c.bf16 %v1403, %v1402
      %v1482 = vpack.c.bf16 %v1405, %v1404
      %v1483 = vpack.c.bf16 %v1407, %v1406
      %v1484 = vpack.c.bf16 %v1409, %v1408
      %v1485 = vpack.c.bf16 %v1411, %v1410
      %v1486 = vpack.c.bf16 %v1413, %v1412
      %v1487 = vpack.c.bf16 %v1415, %v1414
      %v1488 = vpack.c.bf16 %v1417, %v1416
      %v1489 = vpack.c.bf16 %v1419, %v1418
      %v1490 = vpack.c.bf16 %v1421, %v1420
      %v1491 = vpack.c.bf16 %v1423, %v1422
      %v1492 = vpack.c.bf16 %v1425, %v1424
      %v1493 = vpack.c.bf16 %v1427, %v1426
      %v1494 = vpack.c.bf16 %v1429, %v1428
      %v1495 = vpack.c.bf16 %v1431, %v1430
      %v1496 = vpack.c.bf16 %v1433, %v1432
      %v1497 = vpack.c.bf16 %v1435, %v1434
      %v1498 = vpack.c.bf16 %v1437, %v1436
      %v1499 = vpack.c.bf16 %v1439, %v1438
      %v1500 = vpack.c.bf16 %v1441, %v1440
      %v1501 = vpack.c.bf16 %v1443, %v1442
      %v1502 = vpack.c.bf16 %v1445, %v1444
      %v1503 = vpack.c.bf16 %v1447, %v1446
      %v1504 = vpack.c.bf16 %v1449, %v1448
      %v1505 = vpack.c.bf16 %v1451, %v1450
      %v1506 = vpack.c.bf16 %v1453, %v1452
      %v1507 = vpack.c.bf16 %v1455, %v1454
      %v1508 = vpack.c.bf16 %v1457, %v1456
      %v1510 = vlaneseq
      %v1511 = vshrl.u32 %v1510, 7
      %v1512 = vsub.s32 0, %v1511
      %v1513 = vrot.slane %v1476, %v1512
      %v1531 = vunpack.c.l.b16 %v1459
      %v1532 = vunpack.c.l.b16 %v1460
      %v1533 = vunpack.c.l.b16 %v1461
      %v1534 = vunpack.c.l.b16 %v1462
      %v1535 = vunpack.c.l.b16 %v1463
      %v1536 = vunpack.c.l.b16 %v1464
      %v1537 = vunpack.c.l.b16 %v1465
      %v1538 = vunpack.c.l.b16 %v1466
      %v1539 = vunpack.c.l.b16 %v1467
      %v1540 = vunpack.c.l.b16 %v1468
      %v1541 = vunpack.c.l.b16 %v1469
      %v1542 = vunpack.c.l.b16 %v1470
      %v1543 = vunpack.c.l.b16 %v1471
      %v1544 = vunpack.c.l.b16 %v1472
      %v1545 = vunpack.c.l.b16 %v1473
      %v1546 = vunpack.c.l.b16 %v1474
      %v1547 = vpack.c.b16 %v1532, %v1531
      %v1548 = vpack.c.b16 %v1534, %v1533
      %v1549 = vpack.c.b16 %v1536, %v1535
      %v1550 = vpack.c.b16 %v1538, %v1537
      %v1551 = vpack.c.b16 %v1540, %v1539
      %v1552 = vpack.c.b16 %v1542, %v1541
      %v1553 = vpack.c.b16 %v1544, %v1543
      %v1554 = vpack.c.b16 %v1546, %v1545
      %1563 = vmatprep.subr.bf16.mxu0 0
      %1564 = vmatpush1.bf16.msra.mxu0 %v1547
      %1565 = vmatprep.subr.bf16.mxu0 0
      %1566 = vmatpush1.bf16.msra.mxu0 %v1548
      %1567 = vmatprep.subr.bf16.mxu0 0
      %1568 = vmatpush1.bf16.msra.mxu0 %v1549
      %1569 = vmatprep.subr.bf16.mxu0 0
      %1570 = vmatpush1.bf16.msra.mxu0 %v1550
      %1571 = vmatprep.subr.bf16.mxu0 0
      %1572 = vmatpush1.bf16.msra.mxu0 %v1551
      %1573 = vmatprep.subr.bf16.mxu0 0
      %1574 = vmatpush1.bf16.msra.mxu0 %v1552
      %1575 = vmatprep.subr.bf16.mxu0 0
      %1576 = vmatpush1.bf16.msra.mxu0 %v1553
      %1577 = vmatprep.subr.bf16.mxu0 0
      %1578 = vmatpush1.bf16.msra.mxu0 %v1554
      %1579 = vmatprep.subr.bf16.mxu0 0
      %1580 = vmatpush1.bf16.msra.mxu0 0
      %1581 = vmatprep.subr.bf16.mxu0 0
      %1582 = vmatpush1.bf16.msra.mxu0 0
      %1583 = vmatprep.subr.bf16.mxu0 0
      %1584 = vmatpush1.bf16.msra.mxu0 0
      %1585 = vmatprep.subr.bf16.mxu0 0
      %1586 = vmatpush1.bf16.msra.mxu0 0
      %1587 = vmatprep.subr.bf16.mxu0 0
      %1588 = vmatpush1.bf16.msra.mxu0 0
      %1589 = vmatprep.subr.bf16.mxu0 0
      %1590 = vmatpush1.bf16.msra.mxu0 0
      %1591 = vmatprep.subr.bf16.mxu0 0
      %1592 = vmatpush1.bf16.msra.mxu0 0
      %1593 = vmatprep.subr.bf16.mxu0 0
      %1594 = vmatpush1.bf16.msra.mxu0 0
      %1595 = vmatprep.mubr.bf16.mxu0 0
      %1596 = vmatmul.mubr.bf16.gmra.mrb[0].mxu0 %v1477
      %v1597 = vpop.f32.mrb[0].mxu0
      %v1598 = vadd.f32 %v1513, %v1597
      %v1599 = vpop.f32.mrb[0].mxu0
      %v1600 = vpop.f32.mrb[0].mxu0
      %v1601 = vadd.f32 %v1513, %v1600
      %v1602 = vpop.f32.mrb[0].mxu0
      %1603 = vmatprep.mubr.bf16.mxu0 0
      %1604 = vmatmul.mubr.bf16.gmra.mrb[0].mxu0 %v1478
      %v1605 = vpop.f32.mrb[0].mxu0
      %v1606 = vadd.f32 %v1513, %v1605
      %v1607 = vpop.f32.mrb[0].mxu0
      %v1608 = vpop.f32.mrb[0].mxu0
      %v1609 = vadd.f32 %v1513, %v1608
      %v1610 = vpop.f32.mrb[0].mxu0
      %1611 = vmatprep.mubr.bf16.mxu0 0
      %1612 = vmatmul.mubr.bf16.gmra.mrb[0].mxu0 %v1479
      %v1613 = vpop.f32.mrb[0].mxu0
      %v1614 = vadd.f32 %v1513, %v1613
      %v1615 = vpop.f32.mrb[0].mxu0
      %v1616 = vpop.f32.mrb[0].mxu0
      %v1617 = vadd.f32 %v1513, %v1616
      %v1618 = vpop.f32.mrb[0].mxu0
      %1619 = vmatprep.mubr.bf16.mxu0 0
      %1620 = vmatmul.mubr.bf16.gmra.mrb[0].mxu0 %v1480
      %v1621 = vpop.f32.mrb[0].mxu0
      %v1622 = vadd.f32 %v1513, %v1621
      %v1623 = vpop.f32.mrb[0].mxu0
      %v1624 = vpop.f32.mrb[0].mxu0
      %v1625 = vadd.f32 %v1513, %v1624
      %v1626 = vpop.f32.mrb[0].mxu0
      %1627 = vmatprep.mubr.bf16.mxu0 0
      %1628 = vmatmul.mubr.bf16.gmra.mrb[0].mxu0 %v1481
      %v1629 = vpop.f32.mrb[0].mxu0
      %v1630 = vadd.f32 %v1513, %v1629
      %v1631 = vpop.f32.mrb[0].mxu0
      %v1632 = vpop.f32.mrb[0].mxu0
      %v1633 = vadd.f32 %v1513, %v1632
      %v1634 = vpop.f32.mrb[0].mxu0
      %1635 = vmatprep.mubr.bf16.mxu0 0
      %1636 = vmatmul.mubr.bf16.gmra.mrb[0].mxu0 %v1482
      %v1637 = vpop.f32.mrb[0].mxu0
      %v1638 = vadd.f32 %v1513, %v1637
      %v1639 = vpop.f32.mrb[0].mxu0
      %v1640 = vpop.f32.mrb[0].mxu0
      %v1641 = vadd.f32 %v1513, %v1640
      %v1642 = vpop.f32.mrb[0].mxu0
      %1643 = vmatprep.mubr.bf16.mxu0 0
      %1644 = vmatmul.mubr.bf16.gmra.mrb[0].mxu0 %v1483
      %v1645 = vpop.f32.mrb[0].mxu0
      %v1646 = vadd.f32 %v1513, %v1645
      %v1647 = vpop.f32.mrb[0].mxu0
      %v1648 = vpop.f32.mrb[0].mxu0
      %v1649 = vadd.f32 %v1513, %v1648
      %v1650 = vpop.f32.mrb[0].mxu0
      %1651 = vmatprep.mubr.bf16.mxu0 0
      %1652 = vmatmul.mubr.bf16.gmra.mrb[0].mxu0 %v1484
      %v1653 = vpop.f32.mrb[0].mxu0
      %v1654 = vadd.f32 %v1513, %v1653
      %v1655 = vpop.f32.mrb[0].mxu0
      %v1656 = vpop.f32.mrb[0].mxu0
      %v1657 = vadd.f32 %v1513, %v1656
      %v1658 = vpop.f32.mrb[0].mxu0
      %1659 = vmatprep.mubr.bf16.mxu0 0
      %1660 = vmatmul.mubr.bf16.gmra.mrb[0].mxu0 %v1485
      %v1661 = vpop.f32.mrb[0].mxu0
      %v1662 = vadd.f32 %v1513, %v1661
      %v1663 = vpop.f32.mrb[0].mxu0
      %v1664 = vpop.f32.mrb[0].mxu0
      %v1665 = vadd.f32 %v1513, %v1664
      %v1666 = vpop.f32.mrb[0].mxu0
      %1667 = vmatprep.mubr.bf16.mxu0 0
      %1668 = vmatmul.mubr.bf16.gmra.mrb[0].mxu0 %v1486
      %v1669 = vpop.f32.mrb[0].mxu0
      %v1670 = vadd.f32 %v1513, %v1669
      %v1671 = vpop.f32.mrb[0].mxu0
      %v1672 = vpop.f32.mrb[0].mxu0
      %v1673 = vadd.f32 %v1513, %v1672
      %v1674 = vpop.f32.mrb[0].mxu0
      %1675 = vmatprep.mubr.bf16.mxu0 0
      %1676 = vmatmul.mubr.bf16.gmra.mrb[0].mxu0 %v1487
      %v1677 = vpop.f32.mrb[0].mxu0
      %v1678 = vadd.f32 %v1513, %v1677
      %v1679 = vpop.f32.mrb[0].mxu0
      %v1680 = vpop.f32.mrb[0].mxu0
      %v1681 = vadd.f32 %v1513, %v1680
      %v1682 = vpop.f32.mrb[0].mxu0
      %1683 = vmatprep.mubr.bf16.mxu0 0
      %1684 = vmatmul.mubr.bf16.gmra.mrb[0].mxu0 %v1488
      %v1685 = vpop.f32.mrb[0].mxu0
      %v1686 = vadd.f32 %v1513, %v1685
      %v1687 = vpop.f32.mrb[0].mxu0
      %v1688 = vpop.f32.mrb[0].mxu0
      %v1689 = vadd.f32 %v1513, %v1688
      %v1690 = vpop.f32.mrb[0].mxu0
      %1691 = vmatprep.mubr.bf16.mxu0 0
      %1692 = vmatmul.mubr.bf16.gmra.mrb[0].mxu0 %v1489
      %v1693 = vpop.f32.mrb[0].mxu0
      %v1694 = vadd.f32 %v1513, %v1693
      %v1695 = vpop.f32.mrb[0].mxu0
      %v1696 = vpop.f32.mrb[0].mxu0
      %v1697 = vadd.f32 %v1513, %v1696
      %v1698 = vpop.f32.mrb[0].mxu0
      %1699 = vmatprep.mubr.bf16.mxu0 0
      %1700 = vmatmul.mubr.bf16.gmra.mrb[0].mxu0 %v1490
      %v1701 = vpop.f32.mrb[0].mxu0
      %v1702 = vadd.f32 %v1513, %v1701
      %v1703 = vpop.f32.mrb[0].mxu0
      %v1704 = vpop.f32.mrb[0].mxu0
      %v1705 = vadd.f32 %v1513, %v1704
      %v1706 = vpop.f32.mrb[0].mxu0
      %1707 = vmatprep.mubr.bf16.mxu0 0
      %1708 = vmatmul.mubr.bf16.gmra.mrb[0].mxu0 %v1491
      %v1709 = vpop.f32.mrb[0].mxu0
      %v1710 = vadd.f32 %v1513, %v1709
      %v1711 = vpop.f32.mrb[0].mxu0
      %v1712 = vpop.f32.mrb[0].mxu0
      %v1713 = vadd.f32 %v1513, %v1712
      %v1714 = vpop.f32.mrb[0].mxu0
      %1715 = vmatprep.mubr.bf16.mxu0 0
      %1716 = vmatmul.mubr.bf16.gmra.mrb[0].mxu0 %v1492
      %v1717 = vpop.f32.mrb[0].mxu0
      %v1718 = vadd.f32 %v1513, %v1717
      %v1719 = vpop.f32.mrb[0].mxu0
      %v1720 = vpop.f32.mrb[0].mxu0
      %v1721 = vadd.f32 %v1513, %v1720
      %v1722 = vpop.f32.mrb[0].mxu0
      %1723 = vmatprep.mubr.bf16.mxu0 0
      %1724 = vmatmul.mubr.bf16.gmra.mrb[0].mxu0 %v1493
      %v1725 = vpop.f32.mrb[0].mxu0
      %v1726 = vadd.f32 %v1513, %v1725
      %v1727 = vpop.f32.mrb[0].mxu0
      %v1728 = vpop.f32.mrb[0].mxu0
      %v1729 = vadd.f32 %v1513, %v1728
      %v1730 = vpop.f32.mrb[0].mxu0
      %1731 = vmatprep.mubr.bf16.mxu0 0
      %1732 = vmatmul.mubr.bf16.gmra.mrb[0].mxu0 %v1494
      %v1733 = vpop.f32.mrb[0].mxu0
      %v1734 = vadd.f32 %v1513, %v1733
      %v1735 = vpop.f32.mrb[0].mxu0
      %v1736 = vpop.f32.mrb[0].mxu0
      %v1737 = vadd.f32 %v1513, %v1736
      %v1738 = vpop.f32.mrb[0].mxu0
      %1739 = vmatprep.mubr.bf16.mxu0 0
      %1740 = vmatmul.mubr.bf16.gmra.mrb[0].mxu0 %v1495
      %v1741 = vpop.f32.mrb[0].mxu0
      %v1742 = vadd.f32 %v1513, %v1741
      %v1743 = vpop.f32.mrb[0].mxu0
      %v1744 = vpop.f32.mrb[0].mxu0
      %v1745 = vadd.f32 %v1513, %v1744
      %v1746 = vpop.f32.mrb[0].mxu0
      %1747 = vmatprep.mubr.bf16.mxu0 0
      %1748 = vmatmul.mubr.bf16.gmra.mrb[0].mxu0 %v1496
      %v1749 = vpop.f32.mrb[0].mxu0
      %v1750 = vadd.f32 %v1513, %v1749
      %v1751 = vpop.f32.mrb[0].mxu0
      %v1752 = vpop.f32.mrb[0].mxu0
      %v1753 = vadd.f32 %v1513, %v1752
      %v1754 = vpop.f32.mrb[0].mxu0
      %1755 = vmatprep.mubr.bf16.mxu0 0
      %1756 = vmatmul.mubr.bf16.gmra.mrb[0].mxu0 %v1497
      %v1757 = vpop.f32.mrb[0].mxu0
      %v1758 = vadd.f32 %v1513, %v1757
      %v1759 = vpop.f32.mrb[0].mxu0
      %v1760 = vpop.f32.mrb[0].mxu0
      %v1761 = vadd.f32 %v1513, %v1760
      %v1762 = vpop.f32.mrb[0].mxu0
      %1763 = vmatprep.mubr.bf16.mxu0 0
      %1764 = vmatmul.mubr.bf16.gmra.mrb[0].mxu0 %v1498
      %v1765 = vpop.f32.mrb[0].mxu0
      %v1766 = vadd.f32 %v1513, %v1765
      %v1767 = vpop.f32.mrb[0].mxu0
      %v1768 = vpop.f32.mrb[0].mxu0
      %v1769 = vadd.f32 %v1513, %v1768
      %v1770 = vpop.f32.mrb[0].mxu0
      %1771 = vmatprep.mubr.bf16.mxu0 0
      %1772 = vmatmul.mubr.bf16.gmra.mrb[0].mxu0 %v1499
      %v1773 = vpop.f32.mrb[0].mxu0
      %v1774 = vadd.f32 %v1513, %v1773
      %v1775 = vpop.f32.mrb[0].mxu0
      %v1776 = vpop.f32.mrb[0].mxu0
      %v1777 = vadd.f32 %v1513, %v1776
      %v1778 = vpop.f32.mrb[0].mxu0
      %1779 = vmatprep.mubr.bf16.mxu0 0
      %1780 = vmatmul.mubr.bf16.gmra.mrb[0].mxu0 %v1500
      %v1781 = vpop.f32.mrb[0].mxu0
      %v1782 = vadd.f32 %v1513, %v1781
      %v1783 = vpop.f32.mrb[0].mxu0
      %v1784 = vpop.f32.mrb[0].mxu0
      %v1785 = vadd.f32 %v1513, %v1784
      %v1786 = vpop.f32.mrb[0].mxu0
      %1787 = vmatprep.mubr.bf16.mxu0 0
      %1788 = vmatmul.mubr.bf16.gmra.mrb[0].mxu0 %v1501
      %v1789 = vpop.f32.mrb[0].mxu0
      %v1790 = vadd.f32 %v1513, %v1789
      %v1791 = vpop.f32.mrb[0].mxu0
      %v1792 = vpop.f32.mrb[0].mxu0
      %v1793 = vadd.f32 %v1513, %v1792
      %v1794 = vpop.f32.mrb[0].mxu0
      %1795 = vmatprep.mubr.bf16.mxu0 0
      %1796 = vmatmul.mubr.bf16.gmra.mrb[0].mxu0 %v1502
      %v1797 = vpop.f32.mrb[0].mxu0
      %v1798 = vadd.f32 %v1513, %v1797
      %v1799 = vpop.f32.mrb[0].mxu0
      %v1800 = vpop.f32.mrb[0].mxu0
      %v1801 = vadd.f32 %v1513, %v1800
      %v1802 = vpop.f32.mrb[0].mxu0
      %1803 = vmatprep.mubr.bf16.mxu0 0
      %1804 = vmatmul.mubr.bf16.gmra.mrb[0].mxu0 %v1503
      %v1805 = vpop.f32.mrb[0].mxu0
      %v1806 = vadd.f32 %v1513, %v1805
      %v1807 = vpop.f32.mrb[0].mxu0
      %v1808 = vpop.f32.mrb[0].mxu0
      %v1809 = vadd.f32 %v1513, %v1808
      %v1810 = vpop.f32.mrb[0].mxu0
      %1811 = vmatprep.mubr.bf16.mxu0 0
      %1812 = vmatmul.mubr.bf16.gmra.mrb[0].mxu0 %v1504
      %v1813 = vpop.f32.mrb[0].mxu0
      %v1814 = vadd.f32 %v1513, %v1813
      %v1815 = vpop.f32.mrb[0].mxu0
      %v1816 = vpop.f32.mrb[0].mxu0
      %v1817 = vadd.f32 %v1513, %v1816
      %v1818 = vpop.f32.mrb[0].mxu0
      %1819 = vmatprep.mubr.bf16.mxu0 0
      %1820 = vmatmul.mubr.bf16.gmra.mrb[0].mxu0 %v1505
      %v1821 = vpop.f32.mrb[0].mxu0
      %v1822 = vadd.f32 %v1513, %v1821
      %v1823 = vpop.f32.mrb[0].mxu0
      %v1824 = vpop.f32.mrb[0].mxu0
      %v1825 = vadd.f32 %v1513, %v1824
      %v1826 = vpop.f32.mrb[0].mxu0
      %1827 = vmatprep.mubr.bf16.mxu0 0
      %1828 = vmatmul.mubr.bf16.gmra.mrb[0].mxu0 %v1506
      %v1829 = vpop.f32.mrb[0].mxu0
      %v1830 = vadd.f32 %v1513, %v1829
      %v1831 = vpop.f32.mrb[0].mxu0
      %v1832 = vpop.f32.mrb[0].mxu0
      %v1833 = vadd.f32 %v1513, %v1832
      %v1834 = vpop.f32.mrb[0].mxu0
      %1835 = vmatprep.mubr.bf16.mxu0 0
      %1836 = vmatmul.mubr.bf16.gmra.mrb[0].mxu0 %v1507
      %v1837 = vpop.f32.mrb[0].mxu0
      %v1838 = vadd.f32 %v1513, %v1837
      %v1839 = vpop.f32.mrb[0].mxu0
      %v1840 = vpop.f32.mrb[0].mxu0
      %v1841 = vadd.f32 %v1513, %v1840
      %v1842 = vpop.f32.mrb[0].mxu0
      %1843 = vmatprep.mubr.bf16.mxu0 0
      %1844 = vmatmul.mubr.bf16.gmra.mrb[0].mxu0 %v1508
      %v1845 = vpop.f32.mrb[0].mxu0
      %v1846 = vadd.f32 %v1513, %v1845
      %v1847 = vpop.f32.mrb[0].mxu0
      %v1848 = vpop.f32.mrb[0].mxu0
      %v1849 = vadd.f32 %v1513, %v1848
      %v1850 = vpop.f32.mrb[0].mxu0
      %1851 = vdwg.mxu0
      %vm1852 = vcmask 64512
      %1853 = vst.msk [vmem:[%s172] sm:$0xff] %vm1852, %v1598
      %1854 = vst.msk [vmem:[%s172 + $0x8] sm:$0xff] %vm1852, %v1601
      %1855 = vst.msk [vmem:[%s172 + $0x10] sm:$0xff] %vm1852, %v1606
      %1856 = vst.msk [vmem:[%s172 + $0x18] sm:$0xff] %vm1852, %v1609
      %1857 = vst.msk [vmem:[%s172 + $0x20] sm:$0xff] %vm1852, %v1614
      %1858 = vst.msk [vmem:[%s172 + $0x28] sm:$0xff] %vm1852, %v1617
      %1859 = vst.msk [vmem:[%s172 + $0x30] sm:$0xff] %vm1852, %v1622
      %1860 = vst.msk [vmem:[%s172 + $0x38] sm:$0xff] %vm1852, %v1625
      %1861 = vst.msk [vmem:[%s172 + $0x40] sm:$0xff] %vm1852, %v1630
      %1862 = vst.msk [vmem:[%s172 + $0x48] sm:$0xff] %vm1852, %v1633
      %1863 = vst.msk [vmem:[%s172 + $0x50] sm:$0xff] %vm1852, %v1638
      %1864 = vst.msk [vmem:[%s172 + $0x58] sm:$0xff] %vm1852, %v1641
      %1865 = vst.msk [vmem:[%s172 + $0x60] sm:$0xff] %vm1852, %v1646
      %1866 = vst.msk [vmem:[%s172 + $0x68] sm:$0xff] %vm1852, %v1649
      %1867 = vst.msk [vmem:[%s172 + $0x70] sm:$0xff] %vm1852, %v1654
      %1868 = vst.msk [vmem:[%s172 + $0x78] sm:$0xff] %vm1852, %v1657
      %1869 = vst.msk [vmem:[%s172 + $0x80] sm:$0xff] %vm1852, %v1662
      %1870 = vst.msk [vmem:[%s172 + $0x88] sm:$0xff] %vm1852, %v1665
      %1871 = vst.msk [vmem:[%s172 + $0x90] sm:$0xff] %vm1852, %v1670
      %1872 = vst.msk [vmem:[%s172 + $0x98] sm:$0xff] %vm1852, %v1673
      %1873 = vst.msk [vmem:[%s172 + $0xa0] sm:$0xff] %vm1852, %v1678
      %1874 = vst.msk [vmem:[%s172 + $0xa8] sm:$0xff] %vm1852, %v1681
      %1875 = vst.msk [vmem:[%s172 + $0xb0] sm:$0xff] %vm1852, %v1686
      %1876 = vst.msk [vmem:[%s172 + $0xb8] sm:$0xff] %vm1852, %v1689
      %1877 = vst.msk [vmem:[%s172 + $0xc0] sm:$0xff] %vm1852, %v1694
      %1878 = vst.msk [vmem:[%s172 + $0xc8] sm:$0xff] %vm1852, %v1697
      %1879 = vst.msk [vmem:[%s172 + $0xd0] sm:$0xff] %vm1852, %v1702
      %1880 = vst.msk [vmem:[%s172 + $0xd8] sm:$0xff] %vm1852, %v1705
      %1881 = vst.msk [vmem:[%s172 + $0xe0] sm:$0xff] %vm1852, %v1710
      %1882 = vst.msk [vmem:[%s172 + $0xe8] sm:$0xff] %vm1852, %v1713
      %1883 = vst.msk [vmem:[%s172 + $0xf0] sm:$0xff] %vm1852, %v1718
      %1884 = vst.msk [vmem:[%s172 + $0xf8] sm:$0xff] %vm1852, %v1721
      %1885 = vst.msk [vmem:[%s172 + $0x100] sm:$0xff] %vm1852, %v1726
      %1886 = vst.msk [vmem:[%s172 + $0x108] sm:$0xff] %vm1852, %v1729
      %1887 = vst.msk [vmem:[%s172 + $0x110] sm:$0xff] %vm1852, %v1734
      %1888 = vst.msk [vmem:[%s172 + $0x118] sm:$0xff] %vm1852, %v1737
      %1889 = vst.msk [vmem:[%s172 + $0x120] sm:$0xff] %vm1852, %v1742
      %1890 = vst.msk [vmem:[%s172 + $0x128] sm:$0xff] %vm1852, %v1745
      %1891 = vst.msk [vmem:[%s172 + $0x130] sm:$0xff] %vm1852, %v1750
      %1892 = vst.msk [vmem:[%s172 + $0x138] sm:$0xff] %vm1852, %v1753
      %1893 = vst.msk [vmem:[%s172 + $0x140] sm:$0xff] %vm1852, %v1758
      %1894 = vst.msk [vmem:[%s172 + $0x148] sm:$0xff] %vm1852, %v1761
      %1895 = vst.msk [vmem:[%s172 + $0x150] sm:$0xff] %vm1852, %v1766
      %1896 = vst.msk [vmem:[%s172 + $0x158] sm:$0xff] %vm1852, %v1769
      %1897 = vst.msk [vmem:[%s172 + $0x160] sm:$0xff] %vm1852, %v1774
      %1898 = vst.msk [vmem:[%s172 + $0x168] sm:$0xff] %vm1852, %v1777
      %1899 = vst.msk [vmem:[%s172 + $0x170] sm:$0xff] %vm1852, %v1782
      %1900 = vst.msk [vmem:[%s172 + $0x178] sm:$0xff] %vm1852, %v1785
      %1901 = vst.msk [vmem:[%s172 + $0x180] sm:$0xff] %vm1852, %v1790
      %1902 = vst.msk [vmem:[%s172 + $0x188] sm:$0xff] %vm1852, %v1793
      %1903 = vst.msk [vmem:[%s172 + $0x190] sm:$0xff] %vm1852, %v1798
      %1904 = vst.msk [vmem:[%s172 + $0x198] sm:$0xff] %vm1852, %v1801
      %1905 = vst.msk [vmem:[%s172 + $0x1a0] sm:$0xff] %vm1852, %v1806
      %1906 = vst.msk [vmem:[%s172 + $0x1a8] sm:$0xff] %vm1852, %v1809
      %1907 = vst.msk [vmem:[%s172 + $0x1b0] sm:$0xff] %vm1852, %v1814
      %1908 = vst.msk [vmem:[%s172 + $0x1b8] sm:$0xff] %vm1852, %v1817
      %1909 = vst.msk [vmem:[%s172 + $0x1c0] sm:$0xff] %vm1852, %v1822
      %1910 = vst.msk [vmem:[%s172 + $0x1c8] sm:$0xff] %vm1852, %v1825
      %1911 = vst.msk [vmem:[%s172 + $0x1d0] sm:$0xff] %vm1852, %v1830
      %1912 = vst.msk [vmem:[%s172 + $0x1d8] sm:$0xff] %vm1852, %v1833
      %1913 = vst.msk [vmem:[%s172 + $0x1e0] sm:$0xff] %vm1852, %v1838
      %1914 = vst.msk [vmem:[%s172 + $0x1e8] sm:$0xff] %vm1852, %v1841
      %1915 = vst.msk [vmem:[%s172 + $0x1f0] sm:$0xff] %vm1852, %v1846
      %1916 = vst.msk [vmem:[%s172 + $0x1f8] sm:$0xff] %vm1852, %v1849
      %s1917 = smul.u32 64, %s14
      %p1918 = scmp.lt.s32.totalorder %s1917, 255
      %s1919 = scalar_select %p1918, %s1917, 255
      %s1920 = smul.addr %s1919, 8
      %s1921 = scalar_lea.vmem %s3, %s1920
      // Predicated region
      $region33: #{_forward.1} parent=31 // pred_check
        %p1922 = pneg %p100
      $region34: #{_forward.1} parent=31 // pred_check_branch
        %1924 = sbr.rel (%p1922) target = $region36
      $region35: #{_forward.1} parent=31 // pred_region
        %s1925 = smul.u32 64, %s14
      $region36: #{_forward.1} parent=31 // pred_fallthru
        _
    $region32: #{_forward.1} parent=5 // pred_fallthru
      _
    %p1926 = scmp.le.s32.totalorder 2, %s9
    // Predicated region
    $region37: #{_forward.1} parent=5 // pred_check
      %p1927 = pneg %p1926
    $region38: #{_forward.1} parent=5 // pred_check_branch
      %1929 = sbr.rel (%p1927) target = $region40
    $region39: #{_forward.1} parent=5 // pred_region
      %s1930 = ssub.s32 %s9, 2
      // Predicated region
      $region41: #{_forward.1} parent=39 // pred_check
        %p1931 = pneg %p106
      $region42: #{_forward.1} parent=39 // pred_check_branch
        %1933 = sbr.rel (%p1931) target = $region44
      $region43: #{_forward.1} parent=39 // pred_region
        %s1934 = smul.u32 64, %s15
        %p1935 = scmp.lt.s32.totalorder %s1934, 255
        %s1936 = scalar_select %p1935, %s1934, 255
        %s1937 = smul.addr %s1936, 8
        %s1938 = scalar_lea.vmem %s3, %s1937
      $region44: #{_forward.1} parent=39 // pred_fallthru
        _
    $region40: #{_forward.1} parent=5 // pred_fallthru
      _
  $region6: #{_forward.1} parent=0 // loop_footer
    %s13 = sadd.s32 1, %s9
  $region7: #{_forward.1} parent=0 // loop_footer_branch
    %8 = sbr.rel target = $region3
  $region8: #{_forward.1} parent=0 // loop_exit
    _

</llo_original>
